<compile_context>
chip_gen: v5e
topology: v5e:2x2
jax: 0.10.0
libtpu: 0.0.40
codegen_flags: <defaults>
</compile_context>

<pallas_src>
import jax
import jax.numpy as jnp
import numpy as np
from jax.experimental import pallas as pl
from jax.experimental.pallas import tpu as pltpu

EPS = 1e-5  # nn.BatchNorm2d default


def _round_up(n, m):
    return ((n + m - 1) // m) * m


# ------------------------------------------------------------ kernel body ---

def _make_kernel(*, Q, Wq, S, Wp, Hp, PADL, M, compute_dtype):
    inv_cnt = 1.0 / float(M)

    def kernel(taps_ref, w1_ref, w2_ref, bn_ref, o_ref):
        # Valid-pixel mask in q-layout, built in-kernel from a lane iota.
        # Wq and S are powers of two -> two ANDs + two compares, no division.
        q_idx = jax.lax.broadcasted_iota(jnp.int32, (1, Q), 1)
        valid = ((jnp.bitwise_and(q_idx, Wq - 1) < Wp)
                 & (jnp.bitwise_and(q_idx, S - 1) < Hp * Wq))
        msk = valid.astype(jnp.float32)                       # (1, Q)

        # Fused MaxPool2d(2): element-wise max of the 4 pre-gathered window
        # taps; the result is already the margin-extended conv-1 input.
        fext1 = jnp.maximum(jnp.maximum(taps_ref[0], taps_ref[1]),
                            jnp.maximum(taps_ref[2], taps_ref[3]))  # (K1, Q+2*PADL)

        def conv_relu_bn(fext, w_ref, bias, gamma, beta, mask_out):
            # 3x3 SAME conv = nine accumulated (Cout, K) @ (K, Q) MXU matmuls
            # against lane-shifted views of the margin-extended activation
            # (no (9K, Q) patch matrix is ever materialized).
            acc = None
            for t in range(9):
                off = (t // 3) * Wq + (t % 3)
                part = jnp.dot(w_ref[t], fext[:, off:off + Q],
                               preferred_element_type=jnp.float32)
                acc = part if acc is None else acc + part
            # bias + ReLU + zero pad positions: one fused VPU elementwise pass
            y = jnp.maximum(acc + bias, 0.0) * msk
            # BatchNorm2d, training-mode batch stats (biased variance),
            # folded into one per-channel scale/shift FMA.
            # TODO(synk): one-pass sum/sumsq is cancellation-prone for very
            # large-magnitude activations; switch to a two-pass reduction then.
            s1 = jnp.sum(y, axis=1, keepdims=True)
            s2 = jnp.sum(y * y, axis=1, keepdims=True)
            mean = s1 * inv_cnt
            var = s2 * inv_cnt - mean * mean
            scale = gamma * jax.lax.rsqrt(var + EPS)
            shift = beta - mean * scale
            out = y * scale + shift
            # keep pads at zero only when the result feeds another conv
            return out * msk if mask_out else out

        y1 = conv_relu_bn(fext1, w1_ref,
                          bn_ref[:, 0:1], bn_ref[:, 1:2], bn_ref[:, 2:3], True)
        cout = y1.shape[0]
        zpad = jnp.zeros((cout, PADL), compute_dtype)
        fext2 = jnp.concatenate([zpad, y1.astype(compute_dtype), zpad], axis=1)
        y2 = conv_relu_bn(fext2, w2_ref,
                          bn_ref[:, 3:4], bn_ref[:, 4:5], bn_ref[:, 5:6], False)
        o_ref[...] = y2      # padded (Cout, Q); the wrapper slices valid pixels

    return kernel


# --------------------------------------------------------------- fused op ---

def down_forward(x_nchw, params, compute_dtype=jnp.bfloat16):
    """MaxPool2d(2) -> (Conv3x3 -> ReLU -> BN) x 2.  NCHW in, NCHW out (f32).

    `compute_dtype` controls the MXU operand dtype (bf16 per the perf review;
    pass jnp.float32 if bit-closeness to an f32 reference is required).
    """
    N, Cin, H, W = x_nchw.shape
    Cout = params["w1"].shape[0]
    Hp, Wp = H // 2, W // 2
    # q-layout geometry: power-of-two row pitch / rows-per-sample so the valid
    # mask is two bit-ops in-kernel and Q is lane-aligned (multiple of 128).
    Wq = pl.next_power_of_2(Wp + 2)          # >= Wp + 2 pad columns
    Hs = pl.next_power_of_2(Hp + 2)          # >= Hp + 1 pad rows
    S = Hs * Wq                              # flat padded size per sample
    Q = N * S                                # flat spatial axis (on the lanes)
    PADL = Wq + 1                            # halo so all 9 tap shifts stay in range
    M = N * Hp * Wp                          # number of valid output pixels
    Kp = _round_up(Cin, 8)                   # pad conv-1 contraction dim

    # -------- wrapper-side layout plumbing (free XLA ops on HBM) ------------
    # Pre-gather the four 2x2 pooling taps, channel-major, straight into the
    # padded-flat q-layout (zeros at pad rows/cols and at the halo margins).
    xt = jnp.transpose(x_nchw, (1, 0, 2, 3)).astype(compute_dtype)  # (Cin,N,H,W)
    xt = xt.reshape(Cin, N, Hp, 2, Wp, 2)
    taps = jnp.stack([xt[:, :, :, i, :, j] for i in (0, 1) for j in (0, 1)],
                     axis=0)                                        # (4,Cin,N,Hp,Wp)
    taps = jnp.pad(taps, ((0, 0), (0, Kp - Cin), (0, 0),
                          (0, Hs - Hp), (0, Wq - Wp)))
    taps = taps.reshape(4, Kp, Q)
    taps = jnp.pad(taps, ((0, 0), (0, 0), (PADL, PADL)))            # halo margins

    # PyTorch conv weight (Cout, Cin, 3, 3) -> (9, Cout, K) per-tap matrices,
    # tap index t = dh*3 + dw (matches the kernel's lane-shift offsets).
    def prep_w(w, k_pad):
        co, ci = w.shape[0], w.shape[1]
        wt = jnp.transpose(w, (2, 3, 0, 1)).reshape(9, co, ci)
        return jnp.pad(wt, ((0, 0), (0, 0), (0, k_pad - ci))).astype(compute_dtype)

    w1p = prep_w(params["w1"], Kp)        # (9, Cout, Kp)
    w2p = prep_w(params["w2"], Cout)      # (9, Cout, Cout)

    # conv biases + BN gamma/beta packed into one (Cout, 6) array.
    bnp = jnp.stack([params["b1"], params["g1"], params["be1"],
                     params["b2"], params["g2"], params["be2"]],
                    axis=1).astype(jnp.float32)

    kernel = _make_kernel(Q=Q, Wq=Wq, S=S, Wp=Wp, Hp=Hp, PADL=PADL, M=M,
                          compute_dtype=compute_dtype)

    # TODO(synk): for real UNet sizes, tile Q (and N) with a grid marked
    # "parallel" (v7x dual TensorCores) and switch BN to a two-pass cross-tile
    # sum/sumsq reduction; at these shapes everything fits in VMEM so the
    # fused, gridless version is already HBM-minimal.
    out_q = pl.pallas_call(
        kernel,
        out_shape=jax.ShapeDtypeStruct((Cout, Q), jnp.float32),
        in_specs=[pl.BlockSpec(memory_space=pltpu.MemorySpace.VMEM)
                  for _ in range(4)],
        out_specs=pl.BlockSpec(memory_space=pltpu.MemorySpace.VMEM),
        compiler_params=pltpu.CompilerParams(
            vmem_limit_bytes=32 * 1024 * 1024),
    )(taps, w1p, w2p, bnp)

    # cheap layout glue back to PyTorch NCHW (valid pixels only)
    out = out_q.reshape(Cout, N, Hs, Wq)[:, :, :Hp, :Wp]
    return jnp.transpose(out, (1, 0, 2, 3))


# ------------------------------------------------------ pure-JAX reference ---

def _ref_forward(x_nchw, p, compute_dtype=jnp.bfloat16):
    """lax.conv reference mirroring the kernel's MXU operand dtype (f32 accum)."""
    x = jnp.transpose(x_nchw, (0, 2, 3, 1)).astype(jnp.float32)     # NHWC
    N, H, W, C = x.shape
    x = x.reshape(N, H // 2, 2, W // 2, 2, C).max(axis=(2, 4))      # MaxPool2d(2)

    def block(h, w, b, g, be):
        w_hwio = jnp.transpose(w, (2, 3, 1, 0)).astype(compute_dtype)
        y = jax.lax.conv_general_dilated(
            h.astype(compute_dtype), w_hwio, (1, 1), "SAME",
            dimension_numbers=("NHWC", "HWIO", "NHWC"),
            preferred_element_type=jnp.float32)
        y = jnp.maximum(y + b.reshape(1, 1, 1, -1), 0.0)
        mean = y.mean(axis=(0, 1, 2), keepdims=True)
        var = ((y - mean) ** 2).mean(axis=(0, 1, 2), keepdims=True)
        return ((y - mean) * jax.lax.rsqrt(var + EPS) * g.reshape(1, 1, 1, -1)
                + be.reshape(1, 1, 1, -1))

    x = block(x, p["w1"], p["b1"], p["g1"], p["be1"])
    x = block(x, p["w2"], p["b2"], p["g2"], p["be2"])
    return jnp.transpose(x, (0, 3, 1, 2))


# ------------------------------------------------------------------- main ---

if __name__ == "__main__":
    key = jax.random.PRNGKey(0)
    in_channels, out_channels = 4, 8
    N, H, W = 2, 16, 16
    ks = jax.random.split(key, 9)

    x = jax.random.normal(ks[0], (N, in_channels, H, W), jnp.float32)

    def conv_w(k, cin, cout):
        # PyTorch layout (Cout, Cin, 3, 3)
        return jax.random.normal(k, (cout, cin, 3, 3), jnp.float32) / np.sqrt(cin * 9)

    params = {
        "w1": conv_w(ks[1], in_channels, out_channels),
        "b1": 0.1 * jax.random.normal(ks[2], (out_channels,), jnp.float32),
        "g1": 1.0 + 0.1 * jax.random.normal(ks[3], (out_channels,), jnp.float32),
        "be1": 0.1 * jax.random.normal(ks[4], (out_channels,), jnp.float32),
        "w2": conv_w(ks[5], out_channels, out_channels),
        "b2": 0.1 * jax.random.normal(ks[6], (out_channels,), jnp.float32),
        "g2": 1.0 + 0.1 * jax.random.normal(ks[7], (out_channels,), jnp.float32),
        "be2": 0.1 * jax.random.normal(ks[8], (out_channels,), jnp.float32),
    }

    out = jax.block_until_ready(down_forward(x, params))
    ref = jax.block_until_ready(_ref_forward(x, params))

    assert out.shape == (N, out_channels, H // 2, W // 2), out.shape
    # bf16 MXU operands (per the perf review): compare against a reference that
    # mirrors the operand dtype; tolerance covers bf16 re-rounding of the
    # layer-1 output at the layer-2 input.  Use compute_dtype=jnp.float32 in
    # down_forward for ~1e-5 agreement with a full-f32 reference.
    err = np.max(np.abs(np.asarray(out) - np.asarray(ref)))
    assert np.allclose(np.asarray(out), np.asarray(ref), atol=2e-2, rtol=2e-2), err
    print("KERNEL_OK")
</pallas_src>

<mosaic_0001>
module attributes {stable_mosaic.version = 11 : i64} {
  func.func @kernel(%arg0: memref<4x8x546xbf16, #tpu.memory_space<vmem>>, %arg1: memref<9x8x8xbf16, #tpu.memory_space<vmem>>, %arg2: memref<9x8x8xbf16, #tpu.memory_space<vmem>>, %arg3: memref<8x6xf32, #tpu.memory_space<vmem>>, %arg4: memref<8x512xf32, #tpu.memory_space<vmem>>) attributes {dimension_semantics = [], scalar_prefetch = 0 : i64, scratch_operands = 0 : i64, tpu.core_type = #tpu.core_type<tc>} {
    %0 = tpu.iota {dimensions = array<i32: 1>} : vector<1x512xi32>
    %c15_i32 = arith.constant 15 : i32
    %1 = vector.broadcast %c15_i32 : i32 to vector<1x512xi32>
    %2 = arith.andi %0, %1 : vector<1x512xi32>
    %c8_i32 = arith.constant 8 : i32
    %3 = vector.broadcast %c8_i32 : i32 to vector<1x512xi32>
    %4 = arith.cmpi slt, %2, %3 : vector<1x512xi32>
    %c255_i32 = arith.constant 255 : i32
    %5 = vector.broadcast %c255_i32 : i32 to vector<1x512xi32>
    %6 = arith.andi %0, %5 : vector<1x512xi32>
    %c128_i32 = arith.constant 128 : i32
    %7 = vector.broadcast %c128_i32 : i32 to vector<1x512xi32>
    %8 = arith.cmpi slt, %6, %7 : vector<1x512xi32>
    %9 = arith.andi %4, %8 : vector<1x512xi1>
    %10 = arith.extui %9 : vector<1x512xi1> to vector<1x512xi32>
    %11 = arith.sitofp %10 : vector<1x512xi32> to vector<1x512xf32>
    %c0 = arith.constant 0 : index
    %c0_0 = arith.constant 0 : index
    %c0_1 = arith.constant 0 : index
    %12 = vector.load %arg0[%c0, %c0_0, %c0_1] : memref<4x8x546xbf16, #tpu.memory_space<vmem>>, vector<1x8x546xbf16>
    %13 = vector.shape_cast %12 : vector<1x8x546xbf16> to vector<8x546xbf16>
    %c1 = arith.constant 1 : index
    %c0_2 = arith.constant 0 : index
    %c0_3 = arith.constant 0 : index
    %14 = vector.load %arg0[%c1, %c0_2, %c0_3] : memref<4x8x546xbf16, #tpu.memory_space<vmem>>, vector<1x8x546xbf16>
    %15 = vector.shape_cast %14 : vector<1x8x546xbf16> to vector<8x546xbf16>
    %16 = arith.maximumf %13, %15 : vector<8x546xbf16>
    %c2 = arith.constant 2 : index
    %c0_4 = arith.constant 0 : index
    %c0_5 = arith.constant 0 : index
    %17 = vector.load %arg0[%c2, %c0_4, %c0_5] : memref<4x8x546xbf16, #tpu.memory_space<vmem>>, vector<1x8x546xbf16>
    %18 = vector.shape_cast %17 : vector<1x8x546xbf16> to vector<8x546xbf16>
    %c3 = arith.constant 3 : index
    %c0_6 = arith.constant 0 : index
    %c0_7 = arith.constant 0 : index
    %19 = vector.load %arg0[%c3, %c0_6, %c0_7] : memref<4x8x546xbf16, #tpu.memory_space<vmem>>, vector<1x8x546xbf16>
    %20 = vector.shape_cast %19 : vector<1x8x546xbf16> to vector<8x546xbf16>
    %21 = arith.maximumf %18, %20 : vector<8x546xbf16>
    %22 = arith.maximumf %16, %21 : vector<8x546xbf16>
    %c0_8 = arith.constant 0 : index
    %c0_9 = arith.constant 0 : index
    %23 = vector.load %arg3[%c0_8, %c0_9] : memref<8x6xf32, #tpu.memory_space<vmem>>, vector<8x1xf32>
    %c0_10 = arith.constant 0 : index
    %c1_11 = arith.constant 1 : index
    %24 = vector.load %arg3[%c0_10, %c1_11] : memref<8x6xf32, #tpu.memory_space<vmem>>, vector<8x1xf32>
    %c0_12 = arith.constant 0 : index
    %c2_13 = arith.constant 2 : index
    %25 = vector.load %arg3[%c0_12, %c2_13] : memref<8x6xf32, #tpu.memory_space<vmem>>, vector<8x1xf32>
    %c0_14 = arith.constant 0 : index
    %c0_15 = arith.constant 0 : index
    %c0_16 = arith.constant 0 : index
    %26 = vector.load %arg1[%c0_14, %c0_15, %c0_16] : memref<9x8x8xbf16, #tpu.memory_space<vmem>>, vector<1x8x8xbf16>
    %27 = vector.shape_cast %26 : vector<1x8x8xbf16> to vector<8x8xbf16>
    %28 = vector.extract_strided_slice %22 {offsets = [0, 0], sizes = [8, 512], strides = [1, 1]} : vector<8x546xbf16> to vector<8x512xbf16>
    %cst = arith.constant dense<0.000000e+00> : vector<8x512xf32>
    %29 = tpu.matmul %27, %28, %cst {dimension_numbers = #tpu.dot_dimension_numbers<[1], [0], [0], [1], [0, 0, 1, 1], [], []>} : vector<8x8xbf16>, vector<8x512xbf16>, vector<8x512xf32> -> vector<8x512xf32>
    %c1_17 = arith.constant 1 : index
    %c0_18 = arith.constant 0 : index
    %c0_19 = arith.constant 0 : index
    %30 = vector.load %arg1[%c1_17, %c0_18, %c0_19] : memref<9x8x8xbf16, #tpu.memory_space<vmem>>, vector<1x8x8xbf16>
    %31 = vector.shape_cast %30 : vector<1x8x8xbf16> to vector<8x8xbf16>
    %32 = vector.extract_strided_slice %22 {offsets = [0, 1], sizes = [8, 512], strides = [1, 1]} : vector<8x546xbf16> to vector<8x512xbf16>
    %cst_20 = arith.constant dense<0.000000e+00> : vector<8x512xf32>
    %33 = tpu.matmul %31, %32, %cst_20 {dimension_numbers = #tpu.dot_dimension_numbers<[1], [0], [0], [1], [0, 0, 1, 1], [], []>} : vector<8x8xbf16>, vector<8x512xbf16>, vector<8x512xf32> -> vector<8x512xf32>
    %34 = arith.addf %29, %33 : vector<8x512xf32>
    %c2_21 = arith.constant 2 : index
    %c0_22 = arith.constant 0 : index
    %c0_23 = arith.constant 0 : index
    %35 = vector.load %arg1[%c2_21, %c0_22, %c0_23] : memref<9x8x8xbf16, #tpu.memory_space<vmem>>, vector<1x8x8xbf16>
    %36 = vector.shape_cast %35 : vector<1x8x8xbf16> to vector<8x8xbf16>
    %37 = vector.extract_strided_slice %22 {offsets = [0, 2], sizes = [8, 512], strides = [1, 1]} : vector<8x546xbf16> to vector<8x512xbf16>
    %cst_24 = arith.constant dense<0.000000e+00> : vector<8x512xf32>
    %38 = tpu.matmul %36, %37, %cst_24 {dimension_numbers = #tpu.dot_dimension_numbers<[1], [0], [0], [1], [0, 0, 1, 1], [], []>} : vector<8x8xbf16>, vector<8x512xbf16>, vector<8x512xf32> -> vector<8x512xf32>
    %39 = arith.addf %34, %38 : vector<8x512xf32>
    %c3_25 = arith.constant 3 : index
    %c0_26 = arith.constant 0 : index
    %c0_27 = arith.constant 0 : index
    %40 = vector.load %arg1[%c3_25, %c0_26, %c0_27] : memref<9x8x8xbf16, #tpu.memory_space<vmem>>, vector<1x8x8xbf16>
    %41 = vector.shape_cast %40 : vector<1x8x8xbf16> to vector<8x8xbf16>
    %42 = vector.extract_strided_slice %22 {offsets = [0, 16], sizes = [8, 512], strides = [1, 1]} : vector<8x546xbf16> to vector<8x512xbf16>
    %cst_28 = arith.constant dense<0.000000e+00> : vector<8x512xf32>
    %43 = tpu.matmul %41, %42, %cst_28 {dimension_numbers = #tpu.dot_dimension_numbers<[1], [0], [0], [1], [0, 0, 1, 1], [], []>} : vector<8x8xbf16>, vector<8x512xbf16>, vector<8x512xf32> -> vector<8x512xf32>
    %44 = arith.addf %39, %43 : vector<8x512xf32>
    %c4 = arith.constant 4 : index
    %c0_29 = arith.constant 0 : index
    %c0_30 = arith.constant 0 : index
    %45 = vector.load %arg1[%c4, %c0_29, %c0_30] : memref<9x8x8xbf16, #tpu.memory_space<vmem>>, vector<1x8x8xbf16>
    %46 = vector.shape_cast %45 : vector<1x8x8xbf16> to vector<8x8xbf16>
    %47 = vector.extract_strided_slice %22 {offsets = [0, 17], sizes = [8, 512], strides = [1, 1]} : vector<8x546xbf16> to vector<8x512xbf16>
    %cst_31 = arith.constant dense<0.000000e+00> : vector<8x512xf32>
    %48 = tpu.matmul %46, %47, %cst_31 {dimension_numbers = #tpu.dot_dimension_numbers<[1], [0], [0], [1], [0, 0, 1, 1], [], []>} : vector<8x8xbf16>, vector<8x512xbf16>, vector<8x512xf32> -> vector<8x512xf32>
    %49 = arith.addf %44, %48 : vector<8x512xf32>
    %c5 = arith.constant 5 : index
    %c0_32 = arith.constant 0 : index
    %c0_33 = arith.constant 0 : index
    %50 = vector.load %arg1[%c5, %c0_32, %c0_33] : memref<9x8x8xbf16, #tpu.memory_space<vmem>>, vector<1x8x8xbf16>
    %51 = vector.shape_cast %50 : vector<1x8x8xbf16> to vector<8x8xbf16>
    %52 = vector.extract_strided_slice %22 {offsets = [0, 18], sizes = [8, 512], strides = [1, 1]} : vector<8x546xbf16> to vector<8x512xbf16>
    %cst_34 = arith.constant dense<0.000000e+00> : vector<8x512xf32>
    %53 = tpu.matmul %51, %52, %cst_34 {dimension_numbers = #tpu.dot_dimension_numbers<[1], [0], [0], [1], [0, 0, 1, 1], [], []>} : vector<8x8xbf16>, vector<8x512xbf16>, vector<8x512xf32> -> vector<8x512xf32>
    %54 = arith.addf %49, %53 : vector<8x512xf32>
    %c6 = arith.constant 6 : index
    %c0_35 = arith.constant 0 : index
    %c0_36 = arith.constant 0 : index
    %55 = vector.load %arg1[%c6, %c0_35, %c0_36] : memref<9x8x8xbf16, #tpu.memory_space<vmem>>, vector<1x8x8xbf16>
    %56 = vector.shape_cast %55 : vector<1x8x8xbf16> to vector<8x8xbf16>
    %57 = vector.extract_strided_slice %22 {offsets = [0, 32], sizes = [8, 512], strides = [1, 1]} : vector<8x546xbf16> to vector<8x512xbf16>
    %cst_37 = arith.constant dense<0.000000e+00> : vector<8x512xf32>
    %58 = tpu.matmul %56, %57, %cst_37 {dimension_numbers = #tpu.dot_dimension_numbers<[1], [0], [0], [1], [0, 0, 1, 1], [], []>} : vector<8x8xbf16>, vector<8x512xbf16>, vector<8x512xf32> -> vector<8x512xf32>
    %59 = arith.addf %54, %58 : vector<8x512xf32>
    %c7 = arith.constant 7 : index
    %c0_38 = arith.constant 0 : index
    %c0_39 = arith.constant 0 : index
    %60 = vector.load %arg1[%c7, %c0_38, %c0_39] : memref<9x8x8xbf16, #tpu.memory_space<vmem>>, vector<1x8x8xbf16>
    %61 = vector.shape_cast %60 : vector<1x8x8xbf16> to vector<8x8xbf16>
    %62 = vector.extract_strided_slice %22 {offsets = [0, 33], sizes = [8, 512], strides = [1, 1]} : vector<8x546xbf16> to vector<8x512xbf16>
    %cst_40 = arith.constant dense<0.000000e+00> : vector<8x512xf32>
    %63 = tpu.matmul %61, %62, %cst_40 {dimension_numbers = #tpu.dot_dimension_numbers<[1], [0], [0], [1], [0, 0, 1, 1], [], []>} : vector<8x8xbf16>, vector<8x512xbf16>, vector<8x512xf32> -> vector<8x512xf32>
    %64 = arith.addf %59, %63 : vector<8x512xf32>
    %c8 = arith.constant 8 : index
    %c0_41 = arith.constant 0 : index
    %c0_42 = arith.constant 0 : index
    %65 = vector.load %arg1[%c8, %c0_41, %c0_42] : memref<9x8x8xbf16, #tpu.memory_space<vmem>>, vector<1x8x8xbf16>
    %66 = vector.shape_cast %65 : vector<1x8x8xbf16> to vector<8x8xbf16>
    %67 = vector.extract_strided_slice %22 {offsets = [0, 34], sizes = [8, 512], strides = [1, 1]} : vector<8x546xbf16> to vector<8x512xbf16>
    %cst_43 = arith.constant dense<0.000000e+00> : vector<8x512xf32>
    %68 = tpu.matmul %66, %67, %cst_43 {dimension_numbers = #tpu.dot_dimension_numbers<[1], [0], [0], [1], [0, 0, 1, 1], [], []>} : vector<8x8xbf16>, vector<8x512xbf16>, vector<8x512xf32> -> vector<8x512xf32>
    %69 = arith.addf %64, %68 : vector<8x512xf32>
    %70 = vector.broadcast %23 : vector<8x1xf32> to vector<8x512xf32>
    %71 = arith.addf %69, %70 : vector<8x512xf32>
    %cst_44 = arith.constant 0.000000e+00 : f32
    %72 = vector.broadcast %cst_44 : f32 to vector<8x512xf32>
    %73 = arith.maximumf %71, %72 : vector<8x512xf32>
    %74 = vector.broadcast %11 : vector<1x512xf32> to vector<8x512xf32>
    %75 = arith.mulf %73, %74 : vector<8x512xf32>
    %cst_45 = arith.constant dense<0.000000e+00> : vector<8xf32>
    %76 = vector.multi_reduction <add>, %75, %cst_45 [1] : vector<8x512xf32> to vector<8xf32>
    %77 = vector.shape_cast %76 : vector<8xf32> to vector<8x1xf32>
    %78 = arith.mulf %75, %75 : vector<8x512xf32>
    %cst_46 = arith.constant dense<0.000000e+00> : vector<8xf32>
    %79 = vector.multi_reduction <add>, %78, %cst_46 [1] : vector<8x512xf32> to vector<8xf32>
    %80 = vector.shape_cast %79 : vector<8xf32> to vector<8x1xf32>
    %cst_47 = arith.constant 7.812500e-03 : f32
    %81 = vector.broadcast %cst_47 : f32 to vector<8x1xf32>
    %82 = arith.mulf %77, %81 : vector<8x1xf32>
    %cst_48 = arith.constant 7.812500e-03 : f32
    %83 = vector.broadcast %cst_48 : f32 to vector<8x1xf32>
    %84 = arith.mulf %80, %83 : vector<8x1xf32>
    %85 = arith.mulf %82, %82 : vector<8x1xf32>
    %86 = arith.subf %84, %85 : vector<8x1xf32>
    %cst_49 = arith.constant 9.99999974E-6 : f32
    %87 = vector.broadcast %cst_49 : f32 to vector<8x1xf32>
    %88 = arith.addf %86, %87 : vector<8x1xf32>
    %89 = math.rsqrt %88 : vector<8x1xf32>
    %90 = arith.mulf %24, %89 : vector<8x1xf32>
    %91 = arith.mulf %82, %90 : vector<8x1xf32>
    %92 = arith.subf %25, %91 : vector<8x1xf32>
    %93 = vector.broadcast %90 : vector<8x1xf32> to vector<8x512xf32>
    %94 = arith.mulf %75, %93 : vector<8x512xf32>
    %95 = vector.broadcast %92 : vector<8x1xf32> to vector<8x512xf32>
    %96 = arith.addf %94, %95 : vector<8x512xf32>
    %97 = vector.broadcast %11 : vector<1x512xf32> to vector<8x512xf32>
    %98 = arith.mulf %96, %97 : vector<8x512xf32>
    %cst_50 = arith.constant 0.000000e+00 : bf16
    %99 = vector.broadcast %cst_50 : bf16 to vector<8x17xbf16>
    %100 = arith.truncf %98 : vector<8x512xf32> to vector<8x512xbf16>
    %101 = tpu.concatenate %99, %100, %99 in 1 : vector<8x17xbf16>, vector<8x512xbf16>, vector<8x17xbf16> -> vector<8x546xbf16>
    %c0_51 = arith.constant 0 : index
    %c3_52 = arith.constant 3 : index
    %102 = vector.load %arg3[%c0_51, %c3_52] : memref<8x6xf32, #tpu.memory_space<vmem>>, vector<8x1xf32>
    %c0_53 = arith.constant 0 : index
    %c4_54 = arith.constant 4 : index
    %103 = vector.load %arg3[%c0_53, %c4_54] : memref<8x6xf32, #tpu.memory_space<vmem>>, vector<8x1xf32>
    %c0_55 = arith.constant 0 : index
    %c5_56 = arith.constant 5 : index
    %104 = vector.load %arg3[%c0_55, %c5_56] : memref<8x6xf32, #tpu.memory_space<vmem>>, vector<8x1xf32>
    %c0_57 = arith.constant 0 : index
    %c0_58 = arith.constant 0 : index
    %c0_59 = arith.constant 0 : index
    %105 = vector.load %arg2[%c0_57, %c0_58, %c0_59] : memref<9x8x8xbf16, #tpu.memory_space<vmem>>, vector<1x8x8xbf16>
    %106 = vector.shape_cast %105 : vector<1x8x8xbf16> to vector<8x8xbf16>
    %107 = vector.extract_strided_slice %101 {offsets = [0, 0], sizes = [8, 512], strides = [1, 1]} : vector<8x546xbf16> to vector<8x512xbf16>
    %cst_60 = arith.constant dense<0.000000e+00> : vector<8x512xf32>
    %108 = tpu.matmul %106, %107, %cst_60 {dimension_numbers = #tpu.dot_dimension_numbers<[1], [0], [0], [1], [0, 0, 1, 1], [], []>} : vector<8x8xbf16>, vector<8x512xbf16>, vector<8x512xf32> -> vector<8x512xf32>
    %c1_61 = arith.constant 1 : index
    %c0_62 = arith.constant 0 : index
    %c0_63 = arith.constant 0 : index
    %109 = vector.load %arg2[%c1_61, %c0_62, %c0_63] : memref<9x8x8xbf16, #tpu.memory_space<vmem>>, vector<1x8x8xbf16>
    %110 = vector.shape_cast %109 : vector<1x8x8xbf16> to vector<8x8xbf16>
    %111 = vector.extract_strided_slice %101 {offsets = [0, 1], sizes = [8, 512], strides = [1, 1]} : vector<8x546xbf16> to vector<8x512xbf16>
    %cst_64 = arith.constant dense<0.000000e+00> : vector<8x512xf32>
    %112 = tpu.matmul %110, %111, %cst_64 {dimension_numbers = #tpu.dot_dimension_numbers<[1], [0], [0], [1], [0, 0, 1, 1], [], []>} : vector<8x8xbf16>, vector<8x512xbf16>, vector<8x512xf32> -> vector<8x512xf32>
    %113 = arith.addf %108, %112 : vector<8x512xf32>
    %c2_65 = arith.constant 2 : index
    %c0_66 = arith.constant 0 : index
    %c0_67 = arith.constant 0 : index
    %114 = vector.load %arg2[%c2_65, %c0_66, %c0_67] : memref<9x8x8xbf16, #tpu.memory_space<vmem>>, vector<1x8x8xbf16>
    %115 = vector.shape_cast %114 : vector<1x8x8xbf16> to vector<8x8xbf16>
    %116 = vector.extract_strided_slice %101 {offsets = [0, 2], sizes = [8, 512], strides = [1, 1]} : vector<8x546xbf16> to vector<8x512xbf16>
    %cst_68 = arith.constant dense<0.000000e+00> : vector<8x512xf32>
    %117 = tpu.matmul %115, %116, %cst_68 {dimension_numbers = #tpu.dot_dimension_numbers<[1], [0], [0], [1], [0, 0, 1, 1], [], []>} : vector<8x8xbf16>, vector<8x512xbf16>, vector<8x512xf32> -> vector<8x512xf32>
    %118 = arith.addf %113, %117 : vector<8x512xf32>
    %c3_69 = arith.constant 3 : index
    %c0_70 = arith.constant 0 : index
    %c0_71 = arith.constant 0 : index
    %119 = vector.load %arg2[%c3_69, %c0_70, %c0_71] : memref<9x8x8xbf16, #tpu.memory_space<vmem>>, vector<1x8x8xbf16>
    %120 = vector.shape_cast %119 : vector<1x8x8xbf16> to vector<8x8xbf16>
    %121 = vector.extract_strided_slice %101 {offsets = [0, 16], sizes = [8, 512], strides = [1, 1]} : vector<8x546xbf16> to vector<8x512xbf16>
    %cst_72 = arith.constant dense<0.000000e+00> : vector<8x512xf32>
    %122 = tpu.matmul %120, %121, %cst_72 {dimension_numbers = #tpu.dot_dimension_numbers<[1], [0], [0], [1], [0, 0, 1, 1], [], []>} : vector<8x8xbf16>, vector<8x512xbf16>, vector<8x512xf32> -> vector<8x512xf32>
    %123 = arith.addf %118, %122 : vector<8x512xf32>
    %c4_73 = arith.constant 4 : index
    %c0_74 = arith.constant 0 : index
    %c0_75 = arith.constant 0 : index
    %124 = vector.load %arg2[%c4_73, %c0_74, %c0_75] : memref<9x8x8xbf16, #tpu.memory_space<vmem>>, vector<1x8x8xbf16>
    %125 = vector.shape_cast %124 : vector<1x8x8xbf16> to vector<8x8xbf16>
    %126 = vector.extract_strided_slice %101 {offsets = [0, 17], sizes = [8, 512], strides = [1, 1]} : vector<8x546xbf16> to vector<8x512xbf16>
    %cst_76 = arith.constant dense<0.000000e+00> : vector<8x512xf32>
    %127 = tpu.matmul %125, %126, %cst_76 {dimension_numbers = #tpu.dot_dimension_numbers<[1], [0], [0], [1], [0, 0, 1, 1], [], []>} : vector<8x8xbf16>, vector<8x512xbf16>, vector<8x512xf32> -> vector<8x512xf32>
    %128 = arith.addf %123, %127 : vector<8x512xf32>
    %c5_77 = arith.constant 5 : index
    %c0_78 = arith.constant 0 : index
    %c0_79 = arith.constant 0 : index
    %129 = vector.load %arg2[%c5_77, %c0_78, %c0_79] : memref<9x8x8xbf16, #tpu.memory_space<vmem>>, vector<1x8x8xbf16>
    %130 = vector.shape_cast %129 : vector<1x8x8xbf16> to vector<8x8xbf16>
    %131 = vector.extract_strided_slice %101 {offsets = [0, 18], sizes = [8, 512], strides = [1, 1]} : vector<8x546xbf16> to vector<8x512xbf16>
    %cst_80 = arith.constant dense<0.000000e+00> : vector<8x512xf32>
    %132 = tpu.matmul %130, %131, %cst_80 {dimension_numbers = #tpu.dot_dimension_numbers<[1], [0], [0], [1], [0, 0, 1, 1], [], []>} : vector<8x8xbf16>, vector<8x512xbf16>, vector<8x512xf32> -> vector<8x512xf32>
    %133 = arith.addf %128, %132 : vector<8x512xf32>
    %c6_81 = arith.constant 6 : index
    %c0_82 = arith.constant 0 : index
    %c0_83 = arith.constant 0 : index
    %134 = vector.load %arg2[%c6_81, %c0_82, %c0_83] : memref<9x8x8xbf16, #tpu.memory_space<vmem>>, vector<1x8x8xbf16>
    %135 = vector.shape_cast %134 : vector<1x8x8xbf16> to vector<8x8xbf16>
    %136 = vector.extract_strided_slice %101 {offsets = [0, 32], sizes = [8, 512], strides = [1, 1]} : vector<8x546xbf16> to vector<8x512xbf16>
    %cst_84 = arith.constant dense<0.000000e+00> : vector<8x512xf32>
    %137 = tpu.matmul %135, %136, %cst_84 {dimension_numbers = #tpu.dot_dimension_numbers<[1], [0], [0], [1], [0, 0, 1, 1], [], []>} : vector<8x8xbf16>, vector<8x512xbf16>, vector<8x512xf32> -> vector<8x512xf32>
    %138 = arith.addf %133, %137 : vector<8x512xf32>
    %c7_85 = arith.constant 7 : index
    %c0_86 = arith.constant 0 : index
    %c0_87 = arith.constant 0 : index
    %139 = vector.load %arg2[%c7_85, %c0_86, %c0_87] : memref<9x8x8xbf16, #tpu.memory_space<vmem>>, vector<1x8x8xbf16>
    %140 = vector.shape_cast %139 : vector<1x8x8xbf16> to vector<8x8xbf16>
    %141 = vector.extract_strided_slice %101 {offsets = [0, 33], sizes = [8, 512], strides = [1, 1]} : vector<8x546xbf16> to vector<8x512xbf16>
    %cst_88 = arith.constant dense<0.000000e+00> : vector<8x512xf32>
    %142 = tpu.matmul %140, %141, %cst_88 {dimension_numbers = #tpu.dot_dimension_numbers<[1], [0], [0], [1], [0, 0, 1, 1], [], []>} : vector<8x8xbf16>, vector<8x512xbf16>, vector<8x512xf32> -> vector<8x512xf32>
    %143 = arith.addf %138, %142 : vector<8x512xf32>
    %c8_89 = arith.constant 8 : index
    %c0_90 = arith.constant 0 : index
    %c0_91 = arith.constant 0 : index
    %144 = vector.load %arg2[%c8_89, %c0_90, %c0_91] : memref<9x8x8xbf16, #tpu.memory_space<vmem>>, vector<1x8x8xbf16>
    %145 = vector.shape_cast %144 : vector<1x8x8xbf16> to vector<8x8xbf16>
    %146 = vector.extract_strided_slice %101 {offsets = [0, 34], sizes = [8, 512], strides = [1, 1]} : vector<8x546xbf16> to vector<8x512xbf16>
    %cst_92 = arith.constant dense<0.000000e+00> : vector<8x512xf32>
    %147 = tpu.matmul %145, %146, %cst_92 {dimension_numbers = #tpu.dot_dimension_numbers<[1], [0], [0], [1], [0, 0, 1, 1], [], []>} : vector<8x8xbf16>, vector<8x512xbf16>, vector<8x512xf32> -> vector<8x512xf32>
    %148 = arith.addf %143, %147 : vector<8x512xf32>
    %149 = vector.broadcast %102 : vector<8x1xf32> to vector<8x512xf32>
    %150 = arith.addf %148, %149 : vector<8x512xf32>
    %cst_93 = arith.constant 0.000000e+00 : f32
    %151 = vector.broadcast %cst_93 : f32 to vector<8x512xf32>
    %152 = arith.maximumf %150, %151 : vector<8x512xf32>
    %153 = vector.broadcast %11 : vector<1x512xf32> to vector<8x512xf32>
    %154 = arith.mulf %152, %153 : vector<8x512xf32>
    %cst_94 = arith.constant dense<0.000000e+00> : vector<8xf32>
    %155 = vector.multi_reduction <add>, %154, %cst_94 [1] : vector<8x512xf32> to vector<8xf32>
    %156 = vector.shape_cast %155 : vector<8xf32> to vector<8x1xf32>
    %157 = arith.mulf %154, %154 : vector<8x512xf32>
    %cst_95 = arith.constant dense<0.000000e+00> : vector<8xf32>
    %158 = vector.multi_reduction <add>, %157, %cst_95 [1] : vector<8x512xf32> to vector<8xf32>
    %159 = vector.shape_cast %158 : vector<8xf32> to vector<8x1xf32>
    %cst_96 = arith.constant 7.812500e-03 : f32
    %160 = vector.broadcast %cst_96 : f32 to vector<8x1xf32>
    %161 = arith.mulf %156, %160 : vector<8x1xf32>
    %cst_97 = arith.constant 7.812500e-03 : f32
    %162 = vector.broadcast %cst_97 : f32 to vector<8x1xf32>
    %163 = arith.mulf %159, %162 : vector<8x1xf32>
    %164 = arith.mulf %161, %161 : vector<8x1xf32>
    %165 = arith.subf %163, %164 : vector<8x1xf32>
    %cst_98 = arith.constant 9.99999974E-6 : f32
    %166 = vector.broadcast %cst_98 : f32 to vector<8x1xf32>
    %167 = arith.addf %165, %166 : vector<8x1xf32>
    %168 = math.rsqrt %167 : vector<8x1xf32>
    %169 = arith.mulf %103, %168 : vector<8x1xf32>
    %170 = arith.mulf %161, %169 : vector<8x1xf32>
    %171 = arith.subf %104, %170 : vector<8x1xf32>
    %172 = vector.broadcast %169 : vector<8x1xf32> to vector<8x512xf32>
    %173 = arith.mulf %154, %172 : vector<8x512xf32>
    %174 = vector.broadcast %171 : vector<8x1xf32> to vector<8x512xf32>
    %175 = arith.addf %173, %174 : vector<8x512xf32>
    %c0_99 = arith.constant 0 : index
    %c0_100 = arith.constant 0 : index
    %176 = vector.load %arg4[%c0_99, %c0_100] : memref<8x512xf32, #tpu.memory_space<vmem>>, vector<8x512xf32>
    tpu.vector_store %arg4[%c0_99, %c0_100], %175 {strides = array<i32>} : memref<8x512xf32, #tpu.memory_space<vmem>>, vector<8x512xf32>,
    return
  }
}

</mosaic_0001>

<llo_original>
// kernel: tpu_custom_call.1
$region0: #{tpu_custom_call.1}
  #allocation0 [shape = 'u32[]', space=smem, size = 0x4, offset = 0x4, fixed_abs, tag = 'smem constant byte address 0x4 - core index']
  #allocation1 [shape = 'u32[72,128]{1,0:T(1,128)}', space=vmem, size = 0x9000, scoped, tag = 'internal scratch']
  %s0 = inlined_call_operand.vmem [shape: bf16[4,8,546], index: 0, kind: input, shape index: {}]
  %s1 = inlined_call_operand.vmem [shape: bf16[9,8,8], index: 1, kind: input, shape index: {}]
  %s2 = inlined_call_operand.vmem [shape: bf16[9,8,8], index: 2, kind: input, shape index: {}]
  %s3 = inlined_call_operand.vmem [shape: f32[8,6], index: 3, kind: input, shape index: {}]
  %s4 = inlined_call_operand.hbm [shape: f32[8,512], index: 4, kind: output, shape index: {}]
  %s5 = sld [smem:[#allocation0]]
  $region26: #{tpu_custom_call.1} parent=0
    _
  %s7 = ssub.s32 1, %s5
  %s8 = scalar_select 0, %s7, %s5
  $region1: #{tpu_custom_call.1} parent=0
    #allocation2 [shape = 'u8[16384]{0}', space=vmem, size = 0x4000, scoped, tag = 'output window, operand 0, single buffered']
    #allocation3 [shape = 's32[1]{0}', space=sflag, size = 0x4, scoped, tag = 'scoped memory for tpu_custom_call.1']
    %9 = vsyncpa [#allocation3], 0
    // Predicated region
    $region2: #{tpu_custom_call.1} parent=1 // pred_check
      _
    $region3: #{tpu_custom_call.1} parent=1 // pred_check_branch
      %11 = sbr.rel (0) target = $region5
    $region4: #{tpu_custom_call.1} parent=1 // pred_region
      _
    $region5: #{tpu_custom_call.1} parent=1 // pred_fallthru
      _
    // Predicated region
    $region6: #{tpu_custom_call.1} parent=1 // pred_check
      _
    $region7: #{tpu_custom_call.1} parent=1 // pred_check_branch
      %13 = sbr.rel (0) target = $region9
    $region8: #{tpu_custom_call.1} parent=1 // pred_region
      _
    $region9: #{tpu_custom_call.1} parent=1 // pred_fallthru
      _
    // Predicated region
    $region10: #{tpu_custom_call.1} parent=1 // pred_check
      _
    $region11: #{tpu_custom_call.1} parent=1 // pred_check_branch
      %15 = sbr.rel (0) target = $region13
    $region12: #{tpu_custom_call.1} parent=1 // pred_region
      _
    $region13: #{tpu_custom_call.1} parent=1 // pred_fallthru
      _
    // Predicated region
    $region14: #{tpu_custom_call.1} parent=1 // pred_check
      _
    $region15: #{tpu_custom_call.1} parent=1 // pred_check_branch
      %17 = sbr.rel (0) target = $region17
    $region16: #{tpu_custom_call.1} parent=1 // pred_region
      _
    $region17: #{tpu_custom_call.1} parent=1 // pred_fallthru
      _
    %v19 = vlaneseq
    %v20 = vand.u32 %v19, 127
    %v21 = vadd.s32 %v20, 128
    %v22 = vadd.s32 %v20, 256
    %v23 = vadd.s32 %v20, 384
    %v24 = vand.u32 %v20, 15
    %v25 = vand.u32 %v21, 15
    %v26 = vand.u32 %v22, 15
    %v27 = vand.u32 %v23, 15
    %vm28 = vcmp.lt.s32.totalorder %v24, 8
    %vm29 = vcmp.lt.s32.totalorder %v25, 8
    %vm30 = vcmp.lt.s32.totalorder %v26, 8
    %vm31 = vcmp.lt.s32.totalorder %v27, 8
    %v32 = vand.u32 %v20, 255
    %v33 = vand.u32 %v21, 255
    %v34 = vand.u32 %v22, 255
    %v35 = vand.u32 %v23, 255
    %vm36 = vcmp.lt.s32.totalorder %v32, 128
    %vm37 = vcmp.lt.s32.totalorder %v33, 128
    %vm38 = vcmp.lt.s32.totalorder %v34, 128
    %vm39 = vcmp.lt.s32.totalorder %v35, 128
    %vm40 = vmand %vm28, %vm36
    %vm41 = vmand %vm29, %vm37
    %vm42 = vmand %vm30, %vm38
    %vm43 = vmand %vm31, %vm39
    %v44 = vsel %vm40, 1, 0
    %v45 = vsel %vm41, 1, 0
    %v46 = vsel %vm42, 1, 0
    %v47 = vsel %vm43, 1, 0
    %v48 = vcvt.s32.f32 %v44
    %v49 = vcvt.s32.f32 %v45
    %v50 = vcvt.s32.f32 %v46
    %v51 = vcvt.s32.f32 %v47
    %v52 = vld [vmem:[%s0] sm:$0xff]
    %v53 = vld [vmem:[%s0 + $0x8] sm:$0xff]
    %v54 = vld [vmem:[%s0 + $0x10] sm:$0xf]
    %s55 = scalar_lea.vmem %s0, 20
    %v56 = vld [vmem:[%s55] sm:$0xff]
    %v57 = vld [vmem:[%s55 + $0x8] sm:$0xff]
    %v58 = vld [vmem:[%s55 + $0x10] sm:$0xf]
    %v59 = vunpack.c.l.bf16 %v52
    %v60 = vunpack.c.h.bf16 %v52
    %v61 = vunpack.c.l.bf16 %v53
    %v62 = vunpack.c.h.bf16 %v53
    %v63 = vunpack.c.l.bf16 %v54
    %v64 = vunpack.c.l.bf16 %v56
    %v65 = vunpack.c.h.bf16 %v56
    %v66 = vunpack.c.l.bf16 %v57
    %v67 = vunpack.c.h.bf16 %v57
    %v68 = vunpack.c.l.bf16 %v58
    %v69 = vmax.f32 %v59, %v64
    %v70 = vmax.f32 %v60, %v65
    %v71 = vmax.f32 %v61, %v66
    %v72 = vmax.f32 %v62, %v67
    %v73 = vmax.f32 %v63, %v68
    %v74 = vpack.c.bf16 %v70, %v69
    %v75 = vpack.c.bf16 %v72, %v71
    %v76 = vpack.c.bf16 %v73, %v73
    %s77 = scalar_lea.vmem %s0, 40
    %v78 = vld [vmem:[%s77] sm:$0xff]
    %v79 = vld [vmem:[%s77 + $0x8] sm:$0xff]
    %v80 = vld [vmem:[%s77 + $0x10] sm:$0xf]
    %s81 = scalar_lea.vmem %s0, 60
    %v82 = vld [vmem:[%s81] sm:$0xff]
    %v83 = vld [vmem:[%s81 + $0x8] sm:$0xff]
    %v84 = vld [vmem:[%s81 + $0x10] sm:$0xf]
    %v85 = vunpack.c.l.bf16 %v78
    %v86 = vunpack.c.h.bf16 %v78
    %v87 = vunpack.c.l.bf16 %v79
    %v88 = vunpack.c.h.bf16 %v79
    %v89 = vunpack.c.l.bf16 %v80
    %v90 = vunpack.c.l.bf16 %v82
    %v91 = vunpack.c.h.bf16 %v82
    %v92 = vunpack.c.l.bf16 %v83
    %v93 = vunpack.c.h.bf16 %v83
    %v94 = vunpack.c.l.bf16 %v84
    %v95 = vmax.f32 %v85, %v90
    %v96 = vmax.f32 %v86, %v91
    %v97 = vmax.f32 %v87, %v92
    %v98 = vmax.f32 %v88, %v93
    %v99 = vmax.f32 %v89, %v94
    %v100 = vpack.c.bf16 %v96, %v95
    %v101 = vpack.c.bf16 %v98, %v97
    %v102 = vpack.c.bf16 %v99, %v99
    %v103 = vunpack.c.l.bf16 %v74
    %v104 = vunpack.c.h.bf16 %v74
    %v105 = vunpack.c.l.bf16 %v75
    %v106 = vunpack.c.h.bf16 %v75
    %v107 = vunpack.c.l.bf16 %v76
    %v108 = vunpack.c.l.bf16 %v100
    %v109 = vunpack.c.h.bf16 %v100
    %v110 = vunpack.c.l.bf16 %v101
    %v111 = vunpack.c.h.bf16 %v101
    %v112 = vunpack.c.l.bf16 %v102
    %v113 = vmax.f32 %v103, %v108
    %v114 = vmax.f32 %v104, %v109
    %v115 = vmax.f32 %v105, %v110
    %v116 = vmax.f32 %v106, %v111
    %v117 = vmax.f32 %v107, %v112
    %v118 = vpack.c.bf16 %v114, %v113
    %v119 = vpack.c.bf16 %v116, %v115
    %v120 = vpack.c.bf16 %v117, %v117
    %v121 = vld [vmem:[%s3] sm:$0xff]
    %v122 = vld [vmem:[%s1] sm:$0xf]
    %s123 = scalar_lea.vmem %s1, 4
    %v124 = vld [vmem:[%s123] sm:$0xf]
    %v128 = vunpack.c.l.b16 %v118
    %v129 = vunpack.c.h.b16 %v118
    %v130 = vunpack.c.l.b16 %v119
    %v131 = vunpack.c.h.b16 %v119
    %v132 = vunpack.c.l.b16 %v120
    %v133 = vpack.c.b16 %v128, %v128
    %v134 = vpack.c.b16 %v129, %v129
    %v135 = vpack.c.b16 %v130, %v130
    %v136 = vpack.c.b16 %v131, %v131
    %v137 = vpack.c.b16 %v132, %v132
    %138 = vrot.lane.b32.xlu0 %v133, 127
    %v139 = vpop.permute.xlu0 %138
    %140 = vrot.lane.b32.xlu0 %v134, 127
    %v141 = vpop.permute.xlu0 %140
    %142 = vrot.lane.b32.xlu0 %v135, 127
    %v143 = vpop.permute.xlu0 %142
    %144 = vrot.lane.b32.xlu0 %v136, 127
    %v145 = vpop.permute.xlu0 %144
    %146 = vrot.lane.b32.xlu0 %v137, 127
    %v147 = vpop.permute.xlu0 %146
    %vm148 = vcmask 1039360
    %v149 = vsel %vm148, %v139, %v141
    %v150 = vsel %vm148, %v141, %v143
    %v151 = vsel %vm148, %v143, %v145
    %v152 = vsel %vm148, %v145, %v147
    %vm153 = vcmask 64512
    %v155 = vsel %vm153, %v124, 0
    %vm157 = vcmask 1043456
    %v159 = vsel %vm157, %v149, 0
    %v162 = vsel %vm157, %v150, 0
    %v165 = vsel %vm157, %v151, 0
    %v168 = vsel %vm157, %v152, 0
    %170 = vmatpush.bf16.msra.mxu0 0
    %171 = vmatpush.bf16.msra.mxu0 0
    %172 = vmatpush.bf16.msra.mxu0 0
    %173 = vmatpush.bf16.msra.mxu0 0
    %174 = vmatpush.bf16.msra.mxu0 0
    %175 = vmatpush.bf16.msra.mxu0 0
    %176 = vmatpush.bf16.msra.mxu0 0
    %177 = vmatpush.bf16.msra.mxu0 %v159
    %178 = vmatmul.bf16.gmra.mxu0 %v155
    %v179 = vpop.f32.mrf.mxu0
    %v180 = vadd.f32 0.0, %v179
    %v181 = vpop.f32.mrf.mxu0
    %182 = vdwg.mxu0
    %183 = vmatpush.bf16.msra.mxu0 0
    %184 = vmatpush.bf16.msra.mxu0 0
    %185 = vmatpush.bf16.msra.mxu0 0
    %186 = vmatpush.bf16.msra.mxu0 0
    %187 = vmatpush.bf16.msra.mxu0 0
    %188 = vmatpush.bf16.msra.mxu0 0
    %189 = vmatpush.bf16.msra.mxu0 0
    %190 = vmatpush.bf16.msra.mxu0 %v162
    %191 = vmatmul.bf16.gmra.mxu0 %v155
    %v192 = vpop.f32.mrf.mxu0
    %v193 = vadd.f32 0.0, %v192
    %v194 = vpop.f32.mrf.mxu0
    %195 = vdwg.mxu0
    %196 = vmatpush.bf16.msra.mxu0 0
    %197 = vmatpush.bf16.msra.mxu0 0
    %198 = vmatpush.bf16.msra.mxu0 0
    %199 = vmatpush.bf16.msra.mxu0 0
    %200 = vmatpush.bf16.msra.mxu0 0
    %201 = vmatpush.bf16.msra.mxu0 0
    %202 = vmatpush.bf16.msra.mxu0 0
    %203 = vmatpush.bf16.msra.mxu0 %v165
    %204 = vmatmul.bf16.gmra.mxu0 %v155
    %v205 = vpop.f32.mrf.mxu0
    %v206 = vadd.f32 0.0, %v205
    %v207 = vpop.f32.mrf.mxu0
    %208 = vdwg.mxu0
    %209 = vmatpush.bf16.msra.mxu0 0
    %210 = vmatpush.bf16.msra.mxu0 0
    %211 = vmatpush.bf16.msra.mxu0 0
    %212 = vmatpush.bf16.msra.mxu0 0
    %213 = vmatpush.bf16.msra.mxu0 0
    %214 = vmatpush.bf16.msra.mxu0 0
    %215 = vmatpush.bf16.msra.mxu0 0
    %216 = vmatpush.bf16.msra.mxu0 %v168
    %217 = vmatmul.bf16.gmra.mxu0 %v155
    %v218 = vpop.f32.mrf.mxu0
    %v219 = vadd.f32 0.0, %v218
    %v220 = vpop.f32.mrf.mxu0
    %221 = vdwg.mxu0
    %v223 = vsel %vm153, %v122, 0
    %v226 = vsel %vm157, %v133, 0
    %v229 = vsel %vm157, %v134, 0
    %v232 = vsel %vm157, %v135, 0
    %v235 = vsel %vm157, %v136, 0
    %237 = vmatpush.bf16.msra.mxu0 0
    %238 = vmatpush.bf16.msra.mxu0 0
    %239 = vmatpush.bf16.msra.mxu0 0
    %240 = vmatpush.bf16.msra.mxu0 0
    %241 = vmatpush.bf16.msra.mxu0 0
    %242 = vmatpush.bf16.msra.mxu0 0
    %243 = vmatpush.bf16.msra.mxu0 0
    %244 = vmatpush.bf16.msra.mxu0 %v226
    %245 = vmatmul.bf16.gmra.mxu0 %v223
    %v246 = vpop.f32.mrf.mxu0
    %v247 = vadd.f32 %v180, %v246
    %v248 = vpop.f32.mrf.mxu0
    %249 = vdwg.mxu0
    %250 = vmatpush.bf16.msra.mxu0 0
    %251 = vmatpush.bf16.msra.mxu0 0
    %252 = vmatpush.bf16.msra.mxu0 0
    %253 = vmatpush.bf16.msra.mxu0 0
    %254 = vmatpush.bf16.msra.mxu0 0
    %255 = vmatpush.bf16.msra.mxu0 0
    %256 = vmatpush.bf16.msra.mxu0 0
    %257 = vmatpush.bf16.msra.mxu0 %v229
    %258 = vmatmul.bf16.gmra.mxu0 %v223
    %v259 = vpop.f32.mrf.mxu0
    %v260 = vadd.f32 %v193, %v259
    %v261 = vpop.f32.mrf.mxu0
    %262 = vdwg.mxu0
    %263 = vmatpush.bf16.msra.mxu0 0
    %264 = vmatpush.bf16.msra.mxu0 0
    %265 = vmatpush.bf16.msra.mxu0 0
    %266 = vmatpush.bf16.msra.mxu0 0
    %267 = vmatpush.bf16.msra.mxu0 0
    %268 = vmatpush.bf16.msra.mxu0 0
    %269 = vmatpush.bf16.msra.mxu0 0
    %270 = vmatpush.bf16.msra.mxu0 %v232
    %271 = vmatmul.bf16.gmra.mxu0 %v223
    %v272 = vpop.f32.mrf.mxu0
    %v273 = vadd.f32 %v206, %v272
    %v274 = vpop.f32.mrf.mxu0
    %275 = vdwg.mxu0
    %276 = vmatpush.bf16.msra.mxu0 0
    %277 = vmatpush.bf16.msra.mxu0 0
    %278 = vmatpush.bf16.msra.mxu0 0
    %279 = vmatpush.bf16.msra.mxu0 0
    %280 = vmatpush.bf16.msra.mxu0 0
    %281 = vmatpush.bf16.msra.mxu0 0
    %282 = vmatpush.bf16.msra.mxu0 0
    %283 = vmatpush.bf16.msra.mxu0 %v235
    %284 = vmatmul.bf16.gmra.mxu0 %v223
    %v285 = vpop.f32.mrf.mxu0
    %v286 = vadd.f32 %v219, %v285
    %v287 = vpop.f32.mrf.mxu0
    %288 = vdwg.mxu0
    %s289 = scalar_lea.vmem %s1, 8
    %v290 = vld [vmem:[%s289] sm:$0xf]
    %291 = vrot.lane.b32.xlu0 %v133, 126
    %v292 = vpop.permute.xlu0 %291
    %293 = vrot.lane.b32.xlu0 %v134, 126
    %v294 = vpop.permute.xlu0 %293
    %295 = vrot.lane.b32.xlu0 %v135, 126
    %v296 = vpop.permute.xlu0 %295
    %297 = vrot.lane.b32.xlu0 %v136, 126
    %v298 = vpop.permute.xlu0 %297
    %299 = vrot.lane.b32.xlu0 %v137, 126
    %v300 = vpop.permute.xlu0 %299
    %vm301 = vcmask 1031168
    %v302 = vsel %vm301, %v292, %v294
    %v303 = vsel %vm301, %v294, %v296
    %v304 = vsel %vm301, %v296, %v298
    %v305 = vsel %vm301, %v298, %v300
    %v307 = vsel %vm153, %v290, 0
    %v310 = vsel %vm157, %v302, 0
    %v313 = vsel %vm157, %v303, 0
    %v316 = vsel %vm157, %v304, 0
    %v319 = vsel %vm157, %v305, 0
    %321 = vmatpush.bf16.msra.mxu0 0
    %322 = vmatpush.bf16.msra.mxu0 0
    %323 = vmatpush.bf16.msra.mxu0 0
    %324 = vmatpush.bf16.msra.mxu0 0
    %325 = vmatpush.bf16.msra.mxu0 0
    %326 = vmatpush.bf16.msra.mxu0 0
    %327 = vmatpush.bf16.msra.mxu0 0
    %328 = vmatpush.bf16.msra.mxu0 %v310
    %329 = vmatmul.bf16.gmra.mxu0 %v307
    %v330 = vpop.f32.mrf.mxu0
    %v331 = vadd.f32 0.0, %v330
    %v332 = vpop.f32.mrf.mxu0
    %333 = vdwg.mxu0
    %334 = vmatpush.bf16.msra.mxu0 0
    %335 = vmatpush.bf16.msra.mxu0 0
    %336 = vmatpush.bf16.msra.mxu0 0
    %337 = vmatpush.bf16.msra.mxu0 0
    %338 = vmatpush.bf16.msra.mxu0 0
    %339 = vmatpush.bf16.msra.mxu0 0
    %340 = vmatpush.bf16.msra.mxu0 0
    %341 = vmatpush.bf16.msra.mxu0 %v313
    %342 = vmatmul.bf16.gmra.mxu0 %v307
    %v343 = vpop.f32.mrf.mxu0
    %v344 = vadd.f32 0.0, %v343
    %v345 = vpop.f32.mrf.mxu0
    %346 = vdwg.mxu0
    %347 = vmatpush.bf16.msra.mxu0 0
    %348 = vmatpush.bf16.msra.mxu0 0
    %349 = vmatpush.bf16.msra.mxu0 0
    %350 = vmatpush.bf16.msra.mxu0 0
    %351 = vmatpush.bf16.msra.mxu0 0
    %352 = vmatpush.bf16.msra.mxu0 0
    %353 = vmatpush.bf16.msra.mxu0 0
    %354 = vmatpush.bf16.msra.mxu0 %v316
    %355 = vmatmul.bf16.gmra.mxu0 %v307
    %v356 = vpop.f32.mrf.mxu0
    %v357 = vadd.f32 0.0, %v356
    %v358 = vpop.f32.mrf.mxu0
    %359 = vdwg.mxu0
    %360 = vmatpush.bf16.msra.mxu0 0
    %361 = vmatpush.bf16.msra.mxu0 0
    %362 = vmatpush.bf16.msra.mxu0 0
    %363 = vmatpush.bf16.msra.mxu0 0
    %364 = vmatpush.bf16.msra.mxu0 0
    %365 = vmatpush.bf16.msra.mxu0 0
    %366 = vmatpush.bf16.msra.mxu0 0
    %367 = vmatpush.bf16.msra.mxu0 %v319
    %368 = vmatmul.bf16.gmra.mxu0 %v307
    %v369 = vpop.f32.mrf.mxu0
    %v370 = vadd.f32 0.0, %v369
    %v371 = vpop.f32.mrf.mxu0
    %372 = vdwg.mxu0
    %v373 = vadd.f32 %v247, %v331
    %v374 = vadd.f32 %v260, %v344
    %v375 = vadd.f32 %v273, %v357
    %v376 = vadd.f32 %v286, %v370
    %s377 = scalar_lea.vmem %s1, 12
    %v378 = vld [vmem:[%s377] sm:$0xf]
    %379 = vrot.lane.b32.xlu0 %v133, 112
    %v380 = vpop.permute.xlu0 %379
    %381 = vrot.lane.b32.xlu0 %v134, 112
    %v382 = vpop.permute.xlu0 %381
    %383 = vrot.lane.b32.xlu0 %v135, 112
    %v384 = vpop.permute.xlu0 %383
    %385 = vrot.lane.b32.xlu0 %v136, 112
    %v386 = vpop.permute.xlu0 %385
    %387 = vrot.lane.b32.xlu0 %v137, 112
    %v388 = vpop.permute.xlu0 %387
    %vm389 = vcmask 916480
    %v390 = vsel %vm389, %v380, %v382
    %v391 = vsel %vm389, %v382, %v384
    %v392 = vsel %vm389, %v384, %v386
    %v393 = vsel %vm389, %v386, %v388
    %v395 = vsel %vm153, %v378, 0
    %v398 = vsel %vm157, %v390, 0
    %v401 = vsel %vm157, %v391, 0
    %v404 = vsel %vm157, %v392, 0
    %v407 = vsel %vm157, %v393, 0
    %409 = vmatpush.bf16.msra.mxu0 0
    %410 = vmatpush.bf16.msra.mxu0 0
    %411 = vmatpush.bf16.msra.mxu0 0
    %412 = vmatpush.bf16.msra.mxu0 0
    %413 = vmatpush.bf16.msra.mxu0 0
    %414 = vmatpush.bf16.msra.mxu0 0
    %415 = vmatpush.bf16.msra.mxu0 0
    %416 = vmatpush.bf16.msra.mxu0 %v398
    %417 = vmatmul.bf16.gmra.mxu0 %v395
    %v418 = vpop.f32.mrf.mxu0
    %v419 = vadd.f32 0.0, %v418
    %v420 = vpop.f32.mrf.mxu0
    %421 = vdwg.mxu0
    %422 = vmatpush.bf16.msra.mxu0 0
    %423 = vmatpush.bf16.msra.mxu0 0
    %424 = vmatpush.bf16.msra.mxu0 0
    %425 = vmatpush.bf16.msra.mxu0 0
    %426 = vmatpush.bf16.msra.mxu0 0
    %427 = vmatpush.bf16.msra.mxu0 0
    %428 = vmatpush.bf16.msra.mxu0 0
    %429 = vmatpush.bf16.msra.mxu0 %v401
    %430 = vmatmul.bf16.gmra.mxu0 %v395
    %v431 = vpop.f32.mrf.mxu0
    %v432 = vadd.f32 0.0, %v431
    %v433 = vpop.f32.mrf.mxu0
    %434 = vdwg.mxu0
    %435 = vmatpush.bf16.msra.mxu0 0
    %436 = vmatpush.bf16.msra.mxu0 0
    %437 = vmatpush.bf16.msra.mxu0 0
    %438 = vmatpush.bf16.msra.mxu0 0
    %439 = vmatpush.bf16.msra.mxu0 0
    %440 = vmatpush.bf16.msra.mxu0 0
    %441 = vmatpush.bf16.msra.mxu0 0
    %442 = vmatpush.bf16.msra.mxu0 %v404
    %443 = vmatmul.bf16.gmra.mxu0 %v395
    %v444 = vpop.f32.mrf.mxu0
    %v445 = vadd.f32 0.0, %v444
    %v446 = vpop.f32.mrf.mxu0
    %447 = vdwg.mxu0
    %448 = vmatpush.bf16.msra.mxu0 0
    %449 = vmatpush.bf16.msra.mxu0 0
    %450 = vmatpush.bf16.msra.mxu0 0
    %451 = vmatpush.bf16.msra.mxu0 0
    %452 = vmatpush.bf16.msra.mxu0 0
    %453 = vmatpush.bf16.msra.mxu0 0
    %454 = vmatpush.bf16.msra.mxu0 0
    %455 = vmatpush.bf16.msra.mxu0 %v407
    %456 = vmatmul.bf16.gmra.mxu0 %v395
    %v457 = vpop.f32.mrf.mxu0
    %v458 = vadd.f32 0.0, %v457
    %v459 = vpop.f32.mrf.mxu0
    %460 = vdwg.mxu0
    %v461 = vadd.f32 %v373, %v419
    %v462 = vadd.f32 %v374, %v432
    %v463 = vadd.f32 %v375, %v445
    %v464 = vadd.f32 %v376, %v458
    %s465 = scalar_lea.vmem %s1, 16
    %v466 = vld [vmem:[%s465] sm:$0xf]
    %467 = vrot.lane.b32.xlu0 %v133, 111
    %v468 = vpop.permute.xlu0 %467
    %469 = vrot.lane.b32.xlu0 %v134, 111
    %v470 = vpop.permute.xlu0 %469
    %471 = vrot.lane.b32.xlu0 %v135, 111
    %v472 = vpop.permute.xlu0 %471
    %473 = vrot.lane.b32.xlu0 %v136, 111
    %v474 = vpop.permute.xlu0 %473
    %475 = vrot.lane.b32.xlu0 %v137, 111
    %v476 = vpop.permute.xlu0 %475
    %vm477 = vcmask 908288
    %v478 = vsel %vm477, %v468, %v470
    %v479 = vsel %vm477, %v470, %v472
    %v480 = vsel %vm477, %v472, %v474
    %v481 = vsel %vm477, %v474, %v476
    %v483 = vsel %vm153, %v466, 0
    %v486 = vsel %vm157, %v478, 0
    %v489 = vsel %vm157, %v479, 0
    %v492 = vsel %vm157, %v480, 0
    %v495 = vsel %vm157, %v481, 0
    %497 = vmatpush.bf16.msra.mxu0 0
    %498 = vmatpush.bf16.msra.mxu0 0
    %499 = vmatpush.bf16.msra.mxu0 0
    %500 = vmatpush.bf16.msra.mxu0 0
    %501 = vmatpush.bf16.msra.mxu0 0
    %502 = vmatpush.bf16.msra.mxu0 0
    %503 = vmatpush.bf16.msra.mxu0 0
    %504 = vmatpush.bf16.msra.mxu0 %v486
    %505 = vmatmul.bf16.gmra.mxu0 %v483
    %v506 = vpop.f32.mrf.mxu0
    %v507 = vadd.f32 0.0, %v506
    %v508 = vpop.f32.mrf.mxu0
    %509 = vdwg.mxu0
    %510 = vmatpush.bf16.msra.mxu0 0
    %511 = vmatpush.bf16.msra.mxu0 0
    %512 = vmatpush.bf16.msra.mxu0 0
    %513 = vmatpush.bf16.msra.mxu0 0
    %514 = vmatpush.bf16.msra.mxu0 0
    %515 = vmatpush.bf16.msra.mxu0 0
    %516 = vmatpush.bf16.msra.mxu0 0
    %517 = vmatpush.bf16.msra.mxu0 %v489
    %518 = vmatmul.bf16.gmra.mxu0 %v483
    %v519 = vpop.f32.mrf.mxu0
    %v520 = vadd.f32 0.0, %v519
    %v521 = vpop.f32.mrf.mxu0
    %522 = vdwg.mxu0
    %523 = vmatpush.bf16.msra.mxu0 0
    %524 = vmatpush.bf16.msra.mxu0 0
    %525 = vmatpush.bf16.msra.mxu0 0
    %526 = vmatpush.bf16.msra.mxu0 0
    %527 = vmatpush.bf16.msra.mxu0 0
    %528 = vmatpush.bf16.msra.mxu0 0
    %529 = vmatpush.bf16.msra.mxu0 0
    %530 = vmatpush.bf16.msra.mxu0 %v492
    %531 = vmatmul.bf16.gmra.mxu0 %v483
    %v532 = vpop.f32.mrf.mxu0
    %v533 = vadd.f32 0.0, %v532
    %v534 = vpop.f32.mrf.mxu0
    %535 = vdwg.mxu0
    %536 = vmatpush.bf16.msra.mxu0 0
    %537 = vmatpush.bf16.msra.mxu0 0
    %538 = vmatpush.bf16.msra.mxu0 0
    %539 = vmatpush.bf16.msra.mxu0 0
    %540 = vmatpush.bf16.msra.mxu0 0
    %541 = vmatpush.bf16.msra.mxu0 0
    %542 = vmatpush.bf16.msra.mxu0 0
    %543 = vmatpush.bf16.msra.mxu0 %v495
    %544 = vmatmul.bf16.gmra.mxu0 %v483
    %v545 = vpop.f32.mrf.mxu0
    %v546 = vadd.f32 0.0, %v545
    %v547 = vpop.f32.mrf.mxu0
    %548 = vdwg.mxu0
    %v549 = vadd.f32 %v461, %v507
    %v550 = vadd.f32 %v462, %v520
    %v551 = vadd.f32 %v463, %v533
    %v552 = vadd.f32 %v464, %v546
    %s553 = scalar_lea.vmem %s1, 20
    %v554 = vld [vmem:[%s553] sm:$0xf]
    %555 = vrot.lane.b32.xlu0 %v133, 110
    %v556 = vpop.permute.xlu0 %555
    %557 = vrot.lane.b32.xlu0 %v134, 110
    %v558 = vpop.permute.xlu0 %557
    %559 = vrot.lane.b32.xlu0 %v135, 110
    %v560 = vpop.permute.xlu0 %559
    %561 = vrot.lane.b32.xlu0 %v136, 110
    %v562 = vpop.permute.xlu0 %561
    %563 = vrot.lane.b32.xlu0 %v137, 110
    %v564 = vpop.permute.xlu0 %563
    %vm565 = vcmask 900096
    %v566 = vsel %vm565, %v556, %v558
    %v567 = vsel %vm565, %v558, %v560
    %v568 = vsel %vm565, %v560, %v562
    %v569 = vsel %vm565, %v562, %v564
    %v571 = vsel %vm153, %v554, 0
    %v574 = vsel %vm157, %v566, 0
    %v577 = vsel %vm157, %v567, 0
    %v580 = vsel %vm157, %v568, 0
    %v583 = vsel %vm157, %v569, 0
    %585 = vmatpush.bf16.msra.mxu0 0
    %586 = vmatpush.bf16.msra.mxu0 0
    %587 = vmatpush.bf16.msra.mxu0 0
    %588 = vmatpush.bf16.msra.mxu0 0
    %589 = vmatpush.bf16.msra.mxu0 0
    %590 = vmatpush.bf16.msra.mxu0 0
    %591 = vmatpush.bf16.msra.mxu0 0
    %592 = vmatpush.bf16.msra.mxu0 %v574
    %593 = vmatmul.bf16.gmra.mxu0 %v571
    %v594 = vpop.f32.mrf.mxu0
    %v595 = vadd.f32 0.0, %v594
    %v596 = vpop.f32.mrf.mxu0
    %597 = vdwg.mxu0
    %598 = vmatpush.bf16.msra.mxu0 0
    %599 = vmatpush.bf16.msra.mxu0 0
    %600 = vmatpush.bf16.msra.mxu0 0
    %601 = vmatpush.bf16.msra.mxu0 0
    %602 = vmatpush.bf16.msra.mxu0 0
    %603 = vmatpush.bf16.msra.mxu0 0
    %604 = vmatpush.bf16.msra.mxu0 0
    %605 = vmatpush.bf16.msra.mxu0 %v577
    %606 = vmatmul.bf16.gmra.mxu0 %v571
    %v607 = vpop.f32.mrf.mxu0
    %v608 = vadd.f32 0.0, %v607
    %v609 = vpop.f32.mrf.mxu0
    %610 = vdwg.mxu0
    %611 = vmatpush.bf16.msra.mxu0 0
    %612 = vmatpush.bf16.msra.mxu0 0
    %613 = vmatpush.bf16.msra.mxu0 0
    %614 = vmatpush.bf16.msra.mxu0 0
    %615 = vmatpush.bf16.msra.mxu0 0
    %616 = vmatpush.bf16.msra.mxu0 0
    %617 = vmatpush.bf16.msra.mxu0 0
    %618 = vmatpush.bf16.msra.mxu0 %v580
    %619 = vmatmul.bf16.gmra.mxu0 %v571
    %v620 = vpop.f32.mrf.mxu0
    %v621 = vadd.f32 0.0, %v620
    %v622 = vpop.f32.mrf.mxu0
    %623 = vdwg.mxu0
    %624 = vmatpush.bf16.msra.mxu0 0
    %625 = vmatpush.bf16.msra.mxu0 0
    %626 = vmatpush.bf16.msra.mxu0 0
    %627 = vmatpush.bf16.msra.mxu0 0
    %628 = vmatpush.bf16.msra.mxu0 0
    %629 = vmatpush.bf16.msra.mxu0 0
    %630 = vmatpush.bf16.msra.mxu0 0
    %631 = vmatpush.bf16.msra.mxu0 %v583
    %632 = vmatmul.bf16.gmra.mxu0 %v571
    %v633 = vpop.f32.mrf.mxu0
    %v634 = vadd.f32 0.0, %v633
    %v635 = vpop.f32.mrf.mxu0
    %636 = vdwg.mxu0
    %v637 = vadd.f32 %v549, %v595
    %v638 = vadd.f32 %v550, %v608
    %v639 = vadd.f32 %v551, %v621
    %v640 = vadd.f32 %v552, %v634
    %s641 = scalar_lea.vmem %s1, 24
    %v642 = vld [vmem:[%s641] sm:$0xf]
    %643 = vrot.lane.b32.xlu0 %v133, 96
    %v644 = vpop.permute.xlu0 %643
    %645 = vrot.lane.b32.xlu0 %v134, 96
    %v646 = vpop.permute.xlu0 %645
    %647 = vrot.lane.b32.xlu0 %v135, 96
    %v648 = vpop.permute.xlu0 %647
    %649 = vrot.lane.b32.xlu0 %v136, 96
    %v650 = vpop.permute.xlu0 %649
    %651 = vrot.lane.b32.xlu0 %v137, 96
    %v652 = vpop.permute.xlu0 %651
    %vm653 = vcmask 785408
    %v654 = vsel %vm653, %v644, %v646
    %v655 = vsel %vm653, %v646, %v648
    %v656 = vsel %vm653, %v648, %v650
    %v657 = vsel %vm653, %v650, %v652
    %v659 = vsel %vm153, %v642, 0
    %v662 = vsel %vm157, %v654, 0
    %v665 = vsel %vm157, %v655, 0
    %v668 = vsel %vm157, %v656, 0
    %v671 = vsel %vm157, %v657, 0
    %673 = vmatpush.bf16.msra.mxu0 0
    %674 = vmatpush.bf16.msra.mxu0 0
    %675 = vmatpush.bf16.msra.mxu0 0
    %676 = vmatpush.bf16.msra.mxu0 0
    %677 = vmatpush.bf16.msra.mxu0 0
    %678 = vmatpush.bf16.msra.mxu0 0
    %679 = vmatpush.bf16.msra.mxu0 0
    %680 = vmatpush.bf16.msra.mxu0 %v662
    %681 = vmatmul.bf16.gmra.mxu0 %v659
    %v682 = vpop.f32.mrf.mxu0
    %v683 = vadd.f32 0.0, %v682
    %v684 = vpop.f32.mrf.mxu0
    %685 = vdwg.mxu0
    %686 = vmatpush.bf16.msra.mxu0 0
    %687 = vmatpush.bf16.msra.mxu0 0
    %688 = vmatpush.bf16.msra.mxu0 0
    %689 = vmatpush.bf16.msra.mxu0 0
    %690 = vmatpush.bf16.msra.mxu0 0
    %691 = vmatpush.bf16.msra.mxu0 0
    %692 = vmatpush.bf16.msra.mxu0 0
    %693 = vmatpush.bf16.msra.mxu0 %v665
    %694 = vmatmul.bf16.gmra.mxu0 %v659
    %v695 = vpop.f32.mrf.mxu0
    %v696 = vadd.f32 0.0, %v695
    %v697 = vpop.f32.mrf.mxu0
    %698 = vdwg.mxu0
    %699 = vmatpush.bf16.msra.mxu0 0
    %700 = vmatpush.bf16.msra.mxu0 0
    %701 = vmatpush.bf16.msra.mxu0 0
    %702 = vmatpush.bf16.msra.mxu0 0
    %703 = vmatpush.bf16.msra.mxu0 0
    %704 = vmatpush.bf16.msra.mxu0 0
    %705 = vmatpush.bf16.msra.mxu0 0
    %706 = vmatpush.bf16.msra.mxu0 %v668
    %707 = vmatmul.bf16.gmra.mxu0 %v659
    %v708 = vpop.f32.mrf.mxu0
    %v709 = vadd.f32 0.0, %v708
    %v710 = vpop.f32.mrf.mxu0
    %711 = vdwg.mxu0
    %712 = vmatpush.bf16.msra.mxu0 0
    %713 = vmatpush.bf16.msra.mxu0 0
    %714 = vmatpush.bf16.msra.mxu0 0
    %715 = vmatpush.bf16.msra.mxu0 0
    %716 = vmatpush.bf16.msra.mxu0 0
    %717 = vmatpush.bf16.msra.mxu0 0
    %718 = vmatpush.bf16.msra.mxu0 0
    %719 = vmatpush.bf16.msra.mxu0 %v671
    %720 = vmatmul.bf16.gmra.mxu0 %v659
    %v721 = vpop.f32.mrf.mxu0
    %v722 = vadd.f32 0.0, %v721
    %v723 = vpop.f32.mrf.mxu0
    %724 = vdwg.mxu0
    %v725 = vadd.f32 %v637, %v683
    %v726 = vadd.f32 %v638, %v696
    %v727 = vadd.f32 %v639, %v709
    %v728 = vadd.f32 %v640, %v722
    %s729 = scalar_lea.vmem %s1, 28
    %v730 = vld [vmem:[%s729] sm:$0xf]
    %731 = vrot.lane.b32.xlu0 %v133, 95
    %v732 = vpop.permute.xlu0 %731
    %733 = vrot.lane.b32.xlu0 %v134, 95
    %v734 = vpop.permute.xlu0 %733
    %735 = vrot.lane.b32.xlu0 %v135, 95
    %v736 = vpop.permute.xlu0 %735
    %737 = vrot.lane.b32.xlu0 %v136, 95
    %v738 = vpop.permute.xlu0 %737
    %739 = vrot.lane.b32.xlu0 %v137, 95
    %v740 = vpop.permute.xlu0 %739
    %vm741 = vcmask 777216
    %v742 = vsel %vm741, %v732, %v734
    %v743 = vsel %vm741, %v734, %v736
    %v744 = vsel %vm741, %v736, %v738
    %v745 = vsel %vm741, %v738, %v740
    %v747 = vsel %vm153, %v730, 0
    %v750 = vsel %vm157, %v742, 0
    %v753 = vsel %vm157, %v743, 0
    %v756 = vsel %vm157, %v744, 0
    %v759 = vsel %vm157, %v745, 0
    %761 = vmatpush.bf16.msra.mxu0 0
    %762 = vmatpush.bf16.msra.mxu0 0
    %763 = vmatpush.bf16.msra.mxu0 0
    %764 = vmatpush.bf16.msra.mxu0 0
    %765 = vmatpush.bf16.msra.mxu0 0
    %766 = vmatpush.bf16.msra.mxu0 0
    %767 = vmatpush.bf16.msra.mxu0 0
    %768 = vmatpush.bf16.msra.mxu0 %v750
    %769 = vmatmul.bf16.gmra.mxu0 %v747
    %v770 = vpop.f32.mrf.mxu0
    %v771 = vadd.f32 0.0, %v770
    %v772 = vpop.f32.mrf.mxu0
    %773 = vdwg.mxu0
    %774 = vmatpush.bf16.msra.mxu0 0
    %775 = vmatpush.bf16.msra.mxu0 0
    %776 = vmatpush.bf16.msra.mxu0 0
    %777 = vmatpush.bf16.msra.mxu0 0
    %778 = vmatpush.bf16.msra.mxu0 0
    %779 = vmatpush.bf16.msra.mxu0 0
    %780 = vmatpush.bf16.msra.mxu0 0
    %781 = vmatpush.bf16.msra.mxu0 %v753
    %782 = vmatmul.bf16.gmra.mxu0 %v747
    %v783 = vpop.f32.mrf.mxu0
    %v784 = vadd.f32 0.0, %v783
    %v785 = vpop.f32.mrf.mxu0
    %786 = vdwg.mxu0
    %787 = vmatpush.bf16.msra.mxu0 0
    %788 = vmatpush.bf16.msra.mxu0 0
    %789 = vmatpush.bf16.msra.mxu0 0
    %790 = vmatpush.bf16.msra.mxu0 0
    %791 = vmatpush.bf16.msra.mxu0 0
    %792 = vmatpush.bf16.msra.mxu0 0
    %793 = vmatpush.bf16.msra.mxu0 0
    %794 = vmatpush.bf16.msra.mxu0 %v756
    %795 = vmatmul.bf16.gmra.mxu0 %v747
    %v796 = vpop.f32.mrf.mxu0
    %v797 = vadd.f32 0.0, %v796
    %v798 = vpop.f32.mrf.mxu0
    %799 = vdwg.mxu0
    %800 = vmatpush.bf16.msra.mxu0 0
    %801 = vmatpush.bf16.msra.mxu0 0
    %802 = vmatpush.bf16.msra.mxu0 0
    %803 = vmatpush.bf16.msra.mxu0 0
    %804 = vmatpush.bf16.msra.mxu0 0
    %805 = vmatpush.bf16.msra.mxu0 0
    %806 = vmatpush.bf16.msra.mxu0 0
    %807 = vmatpush.bf16.msra.mxu0 %v759
    %808 = vmatmul.bf16.gmra.mxu0 %v747
    %v809 = vpop.f32.mrf.mxu0
    %v810 = vadd.f32 0.0, %v809
    %v811 = vpop.f32.mrf.mxu0
    %812 = vdwg.mxu0
    %v813 = vadd.f32 %v725, %v771
    %v814 = vadd.f32 %v726, %v784
    %v815 = vadd.f32 %v727, %v797
    %v816 = vadd.f32 %v728, %v810
    %s817 = scalar_lea.vmem %s1, 32
    %v818 = vld [vmem:[%s817] sm:$0xf]
    %819 = vrot.lane.b32.xlu0 %v133, 94
    %v820 = vpop.permute.xlu0 %819
    %821 = vrot.lane.b32.xlu0 %v134, 94
    %v822 = vpop.permute.xlu0 %821
    %823 = vrot.lane.b32.xlu0 %v135, 94
    %v824 = vpop.permute.xlu0 %823
    %825 = vrot.lane.b32.xlu0 %v136, 94
    %v826 = vpop.permute.xlu0 %825
    %827 = vrot.lane.b32.xlu0 %v137, 94
    %v828 = vpop.permute.xlu0 %827
    %vm829 = vcmask 769024
    %v830 = vsel %vm829, %v820, %v822
    %v831 = vsel %vm829, %v822, %v824
    %v832 = vsel %vm829, %v824, %v826
    %v833 = vsel %vm829, %v826, %v828
    %v835 = vsel %vm153, %v818, 0
    %v838 = vsel %vm157, %v830, 0
    %v841 = vsel %vm157, %v831, 0
    %v844 = vsel %vm157, %v832, 0
    %v847 = vsel %vm157, %v833, 0
    %849 = vmatpush.bf16.msra.mxu0 0
    %850 = vmatpush.bf16.msra.mxu0 0
    %851 = vmatpush.bf16.msra.mxu0 0
    %852 = vmatpush.bf16.msra.mxu0 0
    %853 = vmatpush.bf16.msra.mxu0 0
    %854 = vmatpush.bf16.msra.mxu0 0
    %855 = vmatpush.bf16.msra.mxu0 0
    %856 = vmatpush.bf16.msra.mxu0 %v838
    %857 = vmatmul.bf16.gmra.mxu0 %v835
    %v858 = vpop.f32.mrf.mxu0
    %v859 = vadd.f32 0.0, %v858
    %v860 = vpop.f32.mrf.mxu0
    %861 = vdwg.mxu0
    %862 = vmatpush.bf16.msra.mxu0 0
    %863 = vmatpush.bf16.msra.mxu0 0
    %864 = vmatpush.bf16.msra.mxu0 0
    %865 = vmatpush.bf16.msra.mxu0 0
    %866 = vmatpush.bf16.msra.mxu0 0
    %867 = vmatpush.bf16.msra.mxu0 0
    %868 = vmatpush.bf16.msra.mxu0 0
    %869 = vmatpush.bf16.msra.mxu0 %v841
    %870 = vmatmul.bf16.gmra.mxu0 %v835
    %v871 = vpop.f32.mrf.mxu0
    %v872 = vadd.f32 0.0, %v871
    %v873 = vpop.f32.mrf.mxu0
    %874 = vdwg.mxu0
    %875 = vmatpush.bf16.msra.mxu0 0
    %876 = vmatpush.bf16.msra.mxu0 0
    %877 = vmatpush.bf16.msra.mxu0 0
    %878 = vmatpush.bf16.msra.mxu0 0
    %879 = vmatpush.bf16.msra.mxu0 0
    %880 = vmatpush.bf16.msra.mxu0 0
    %881 = vmatpush.bf16.msra.mxu0 0
    %882 = vmatpush.bf16.msra.mxu0 %v844
    %883 = vmatmul.bf16.gmra.mxu0 %v835
    %v884 = vpop.f32.mrf.mxu0
    %v885 = vadd.f32 0.0, %v884
    %v886 = vpop.f32.mrf.mxu0
    %887 = vdwg.mxu0
    %888 = vmatpush.bf16.msra.mxu0 0
    %889 = vmatpush.bf16.msra.mxu0 0
    %890 = vmatpush.bf16.msra.mxu0 0
    %891 = vmatpush.bf16.msra.mxu0 0
    %892 = vmatpush.bf16.msra.mxu0 0
    %893 = vmatpush.bf16.msra.mxu0 0
    %894 = vmatpush.bf16.msra.mxu0 0
    %895 = vmatpush.bf16.msra.mxu0 %v847
    %896 = vmatmul.bf16.gmra.mxu0 %v835
    %v897 = vpop.f32.mrf.mxu0
    %v898 = vadd.f32 0.0, %v897
    %v899 = vpop.f32.mrf.mxu0
    %900 = vdwg.mxu0
    %v901 = vadd.f32 %v813, %v859
    %v902 = vadd.f32 %v814, %v872
    %v903 = vadd.f32 %v815, %v885
    %v904 = vadd.f32 %v816, %v898
    %906 = vset.pattern.permute.xlu0 0
    %907 = vperm.xlu0 %906, %v121
    %v908 = vpop.permute.xlu0 %907
    %v910 = vadd.f32 %v901, %v908
    %v911 = vadd.f32 %v902, %v908
    %v912 = vadd.f32 %v903, %v908
    %v913 = vadd.f32 %v904, %v908
    %v914 = vmax.f32 %v910, 0.0
    %v915 = vmax.f32 %v911, 0.0
    %v916 = vmax.f32 %v912, 0.0
    %v917 = vmax.f32 %v913, 0.0
    %v918 = vmul.f32 %v914, %v48
    %v919 = vmul.f32 %v915, %v49
    %v920 = vmul.f32 %v916, %v50
    %v921 = vmul.f32 %v917, %v51
    %v922 = vadd.f32 %v918, %v919
    %v923 = vadd.f32 %v922, %v920
    %v924 = vadd.f32 %v923, %v921
    %925 = vadd.xlane.f32.xlu0 %v924
    %v926 = vpop.xlane.xlu0 %925
    %v927 = vmul.f32 %v918, %v918
    %v928 = vmul.f32 %v919, %v919
    %v929 = vmul.f32 %v920, %v920
    %v930 = vmul.f32 %v921, %v921
    %v931 = vadd.f32 %v927, %v928
    %v932 = vadd.f32 %v931, %v929
    %v933 = vadd.f32 %v932, %v930
    %934 = vadd.xlane.f32.xlu0 %v933
    %v935 = vpop.xlane.xlu0 %934
    %v936 = vmul.f32 %v926, 0.0078125
    %v937 = vmul.f32 %v935, 0.0078125
    %v938 = vmul.f32 %v936, %v936
    %v939 = vsub.f32 %v937, %v938
    %v940 = vadd.f32 %v939, 1e-05
    %v941 = vrsqrt.pop %v940
    %v942 = vmul.f32 %v941, %v940
    %v943 = vmul.f32 %v942, %v941
    %v944 = vmul.f32 0.5, %v943
    %v945 = vsub.f32 1.5, %v944
    %v946 = vmul.f32 %v941, %v945
    %vm947 = vweird.f32 %v940
    %vm948 = vweird.f32 %v941
    %vm949 = vmor %vm947, %vm948
    %v950 = vsel %vm949, %v941, %v946
    %v951 = vmul.f32 %v121, %v950
    %v952 = vmul.f32 %v936, %v951
    %954 = vrot.lane.b32.xlu0 %v952, 1
    %v955 = vpop.permute.xlu0 %954
    %v957 = vsub.f32 %v121, %v955
    %959 = vset.pattern.permute.xlu0 1
    %960 = vperm.xlu0 %959, %v951
    %v961 = vpop.permute.xlu0 %960
    %v963 = vmul.f32 %v918, %v961
    %v964 = vmul.f32 %v919, %v961
    %v965 = vmul.f32 %v920, %v961
    %v966 = vmul.f32 %v921, %v961
    %968 = vset.pattern.permute.xlu0 2
    %969 = vperm.xlu0 %968, %v957
    %v970 = vpop.permute.xlu0 %969
    %v972 = vadd.f32 %v963, %v970
    %v973 = vadd.f32 %v964, %v970
    %v974 = vadd.f32 %v965, %v970
    %v975 = vadd.f32 %v966, %v970
    %v976 = vmul.f32 %v972, %v48
    %v977 = vmul.f32 %v973, %v49
    %v978 = vmul.f32 %v974, %v50
    %v979 = vmul.f32 %v975, %v51
    %v980 = vpack.c.bf16 %v977, %v976
    %v981 = vpack.c.bf16 %v979, %v978
    %v984 = vunpack.c.l.b16 %v980
    %v985 = vunpack.c.h.b16 %v980
    %v986 = vunpack.c.l.b16 %v981
    %v987 = vunpack.c.h.b16 %v981
    %v988 = vpack.c.b16 %v984, %v984
    %v989 = vpack.c.b16 %v985, %v985
    %v990 = vpack.c.b16 %v986, %v986
    %v991 = vpack.c.b16 %v987, %v987
    %992 = vrot.lane.b32.xlu0 %v988, 17
    %v993 = vpop.permute.xlu0 %992
    %994 = vrot.lane.b32.xlu0 %v989, 17
    %v995 = vpop.permute.xlu0 %994
    %996 = vrot.lane.b32.xlu0 %v990, 17
    %v997 = vpop.permute.xlu0 %996
    %998 = vrot.lane.b32.xlu0 %v991, 17
    %v999 = vpop.permute.xlu0 %998
    %vm1000 = vcmask 138240
    %v1001 = vsel %vm1000, %v993, %v995
    %v1002 = vsel %vm1000, %v995, %v997
    %v1003 = vsel %vm1000, %v997, %v999
    %vm1004 = vcmask 138240
    %v1007 = vsel %vm1004, 0, %v993
    %v1009 = vsel %vm1004, %v999, 0
    %v1010 = vld [vmem:[%s2] sm:$0xf]
    %s1011 = scalar_lea.vmem %s2, 4
    %v1012 = vld [vmem:[%s1011] sm:$0xf]
    %1015 = vrot.lane.b32.xlu0 %v1007, 127
    %v1016 = vpop.permute.xlu0 %1015
    %1017 = vrot.lane.b32.xlu0 %v1001, 127
    %v1018 = vpop.permute.xlu0 %1017
    %1019 = vrot.lane.b32.xlu0 %v1002, 127
    %v1020 = vpop.permute.xlu0 %1019
    %1021 = vrot.lane.b32.xlu0 %v1003, 127
    %v1022 = vpop.permute.xlu0 %1021
    %1023 = vrot.lane.b32.xlu0 %v1009, 127
    %v1024 = vpop.permute.xlu0 %1023
    %v1025 = vsel %vm148, %v1016, %v1018
    %v1026 = vsel %vm148, %v1018, %v1020
    %v1027 = vsel %vm148, %v1020, %v1022
    %v1028 = vsel %vm148, %v1022, %v1024
    %v1030 = vsel %vm153, %v1012, 0
    %v1033 = vsel %vm157, %v1025, 0
    %v1036 = vsel %vm157, %v1026, 0
    %v1039 = vsel %vm157, %v1027, 0
    %v1042 = vsel %vm157, %v1028, 0
    %1044 = vmatpush.bf16.msra.mxu0 0
    %1045 = vmatpush.bf16.msra.mxu0 0
    %1046 = vmatpush.bf16.msra.mxu0 0
    %1047 = vmatpush.bf16.msra.mxu0 0
    %1048 = vmatpush.bf16.msra.mxu0 0
    %1049 = vmatpush.bf16.msra.mxu0 0
    %1050 = vmatpush.bf16.msra.mxu0 0
    %1051 = vmatpush.bf16.msra.mxu0 %v1033
    %1052 = vmatmul.bf16.gmra.mxu0 %v1030
    %v1053 = vpop.f32.mrf.mxu0
    %v1054 = vadd.f32 0.0, %v1053
    %v1055 = vpop.f32.mrf.mxu0
    %1056 = vdwg.mxu0
    %1057 = vmatpush.bf16.msra.mxu0 0
    %1058 = vmatpush.bf16.msra.mxu0 0
    %1059 = vmatpush.bf16.msra.mxu0 0
    %1060 = vmatpush.bf16.msra.mxu0 0
    %1061 = vmatpush.bf16.msra.mxu0 0
    %1062 = vmatpush.bf16.msra.mxu0 0
    %1063 = vmatpush.bf16.msra.mxu0 0
    %1064 = vmatpush.bf16.msra.mxu0 %v1036
    %1065 = vmatmul.bf16.gmra.mxu0 %v1030
    %v1066 = vpop.f32.mrf.mxu0
    %v1067 = vadd.f32 0.0, %v1066
    %v1068 = vpop.f32.mrf.mxu0
    %1069 = vdwg.mxu0
    %1070 = vmatpush.bf16.msra.mxu0 0
    %1071 = vmatpush.bf16.msra.mxu0 0
    %1072 = vmatpush.bf16.msra.mxu0 0
    %1073 = vmatpush.bf16.msra.mxu0 0
    %1074 = vmatpush.bf16.msra.mxu0 0
    %1075 = vmatpush.bf16.msra.mxu0 0
    %1076 = vmatpush.bf16.msra.mxu0 0
    %1077 = vmatpush.bf16.msra.mxu0 %v1039
    %1078 = vmatmul.bf16.gmra.mxu0 %v1030
    %v1079 = vpop.f32.mrf.mxu0
    %v1080 = vadd.f32 0.0, %v1079
    %v1081 = vpop.f32.mrf.mxu0
    %1082 = vdwg.mxu0
    %1083 = vmatpush.bf16.msra.mxu0 0
    %1084 = vmatpush.bf16.msra.mxu0 0
    %1085 = vmatpush.bf16.msra.mxu0 0
    %1086 = vmatpush.bf16.msra.mxu0 0
    %1087 = vmatpush.bf16.msra.mxu0 0
    %1088 = vmatpush.bf16.msra.mxu0 0
    %1089 = vmatpush.bf16.msra.mxu0 0
    %1090 = vmatpush.bf16.msra.mxu0 %v1042
    %1091 = vmatmul.bf16.gmra.mxu0 %v1030
    %v1092 = vpop.f32.mrf.mxu0
    %v1093 = vadd.f32 0.0, %v1092
    %v1094 = vpop.f32.mrf.mxu0
    %1095 = vdwg.mxu0
    %v1097 = vsel %vm153, %v1010, 0
    %v1099 = vsel %vm157, %v1007, 0
    %v1102 = vsel %vm157, %v1001, 0
    %v1105 = vsel %vm157, %v1002, 0
    %v1108 = vsel %vm157, %v1003, 0
    %1110 = vmatpush.bf16.msra.mxu0 0
    %1111 = vmatpush.bf16.msra.mxu0 0
    %1112 = vmatpush.bf16.msra.mxu0 0
    %1113 = vmatpush.bf16.msra.mxu0 0
    %1114 = vmatpush.bf16.msra.mxu0 0
    %1115 = vmatpush.bf16.msra.mxu0 0
    %1116 = vmatpush.bf16.msra.mxu0 0
    %1117 = vmatpush.bf16.msra.mxu0 %v1099
    %1118 = vmatmul.bf16.gmra.mxu0 %v1097
    %v1119 = vpop.f32.mrf.mxu0
    %v1120 = vadd.f32 %v1054, %v1119
    %v1121 = vpop.f32.mrf.mxu0
    %1122 = vdwg.mxu0
    %1123 = vmatpush.bf16.msra.mxu0 0
    %1124 = vmatpush.bf16.msra.mxu0 0
    %1125 = vmatpush.bf16.msra.mxu0 0
    %1126 = vmatpush.bf16.msra.mxu0 0
    %1127 = vmatpush.bf16.msra.mxu0 0
    %1128 = vmatpush.bf16.msra.mxu0 0
    %1129 = vmatpush.bf16.msra.mxu0 0
    %1130 = vmatpush.bf16.msra.mxu0 %v1102
    %1131 = vmatmul.bf16.gmra.mxu0 %v1097
    %v1132 = vpop.f32.mrf.mxu0
    %v1133 = vadd.f32 %v1067, %v1132
    %v1134 = vpop.f32.mrf.mxu0
    %1135 = vdwg.mxu0
    %1136 = vmatpush.bf16.msra.mxu0 0
    %1137 = vmatpush.bf16.msra.mxu0 0
    %1138 = vmatpush.bf16.msra.mxu0 0
    %1139 = vmatpush.bf16.msra.mxu0 0
    %1140 = vmatpush.bf16.msra.mxu0 0
    %1141 = vmatpush.bf16.msra.mxu0 0
    %1142 = vmatpush.bf16.msra.mxu0 0
    %1143 = vmatpush.bf16.msra.mxu0 %v1105
    %1144 = vmatmul.bf16.gmra.mxu0 %v1097
    %v1145 = vpop.f32.mrf.mxu0
    %v1146 = vadd.f32 %v1080, %v1145
    %v1147 = vpop.f32.mrf.mxu0
    %1148 = vdwg.mxu0
    %1149 = vmatpush.bf16.msra.mxu0 0
    %1150 = vmatpush.bf16.msra.mxu0 0
    %1151 = vmatpush.bf16.msra.mxu0 0
    %1152 = vmatpush.bf16.msra.mxu0 0
    %1153 = vmatpush.bf16.msra.mxu0 0
    %1154 = vmatpush.bf16.msra.mxu0 0
    %1155 = vmatpush.bf16.msra.mxu0 0
    %1156 = vmatpush.bf16.msra.mxu0 %v1108
    %1157 = vmatmul.bf16.gmra.mxu0 %v1097
    %v1158 = vpop.f32.mrf.mxu0
    %v1159 = vadd.f32 %v1093, %v1158
    %v1160 = vpop.f32.mrf.mxu0
    %1161 = vdwg.mxu0
    %s1162 = scalar_lea.vmem %s2, 8
    %v1163 = vld [vmem:[%s1162] sm:$0xf]
    %1164 = vrot.lane.b32.xlu0 %v1007, 126
    %v1165 = vpop.permute.xlu0 %1164
    %1166 = vrot.lane.b32.xlu0 %v1001, 126
    %v1167 = vpop.permute.xlu0 %1166
    %1168 = vrot.lane.b32.xlu0 %v1002, 126
    %v1169 = vpop.permute.xlu0 %1168
    %1170 = vrot.lane.b32.xlu0 %v1003, 126
    %v1171 = vpop.permute.xlu0 %1170
    %1172 = vrot.lane.b32.xlu0 %v1009, 126
    %v1173 = vpop.permute.xlu0 %1172
    %v1174 = vsel %vm301, %v1165, %v1167
    %v1175 = vsel %vm301, %v1167, %v1169
    %v1176 = vsel %vm301, %v1169, %v1171
    %v1177 = vsel %vm301, %v1171, %v1173
    %v1179 = vsel %vm153, %v1163, 0
    %v1182 = vsel %vm157, %v1174, 0
    %v1185 = vsel %vm157, %v1175, 0
    %v1188 = vsel %vm157, %v1176, 0
    %v1191 = vsel %vm157, %v1177, 0
    %1193 = vmatpush.bf16.msra.mxu0 0
    %1194 = vmatpush.bf16.msra.mxu0 0
    %1195 = vmatpush.bf16.msra.mxu0 0
    %1196 = vmatpush.bf16.msra.mxu0 0
    %1197 = vmatpush.bf16.msra.mxu0 0
    %1198 = vmatpush.bf16.msra.mxu0 0
    %1199 = vmatpush.bf16.msra.mxu0 0
    %1200 = vmatpush.bf16.msra.mxu0 %v1182
    %1201 = vmatmul.bf16.gmra.mxu0 %v1179
    %v1202 = vpop.f32.mrf.mxu0
    %v1203 = vadd.f32 0.0, %v1202
    %v1204 = vpop.f32.mrf.mxu0
    %1205 = vdwg.mxu0
    %1206 = vmatpush.bf16.msra.mxu0 0
    %1207 = vmatpush.bf16.msra.mxu0 0
    %1208 = vmatpush.bf16.msra.mxu0 0
    %1209 = vmatpush.bf16.msra.mxu0 0
    %1210 = vmatpush.bf16.msra.mxu0 0
    %1211 = vmatpush.bf16.msra.mxu0 0
    %1212 = vmatpush.bf16.msra.mxu0 0
    %1213 = vmatpush.bf16.msra.mxu0 %v1185
    %1214 = vmatmul.bf16.gmra.mxu0 %v1179
    %v1215 = vpop.f32.mrf.mxu0
    %v1216 = vadd.f32 0.0, %v1215
    %v1217 = vpop.f32.mrf.mxu0
    %1218 = vdwg.mxu0
    %1219 = vmatpush.bf16.msra.mxu0 0
    %1220 = vmatpush.bf16.msra.mxu0 0
    %1221 = vmatpush.bf16.msra.mxu0 0
    %1222 = vmatpush.bf16.msra.mxu0 0
    %1223 = vmatpush.bf16.msra.mxu0 0
    %1224 = vmatpush.bf16.msra.mxu0 0
    %1225 = vmatpush.bf16.msra.mxu0 0
    %1226 = vmatpush.bf16.msra.mxu0 %v1188
    %1227 = vmatmul.bf16.gmra.mxu0 %v1179
    %v1228 = vpop.f32.mrf.mxu0
    %v1229 = vadd.f32 0.0, %v1228
    %v1230 = vpop.f32.mrf.mxu0
    %1231 = vdwg.mxu0
    %1232 = vmatpush.bf16.msra.mxu0 0
    %1233 = vmatpush.bf16.msra.mxu0 0
    %1234 = vmatpush.bf16.msra.mxu0 0
    %1235 = vmatpush.bf16.msra.mxu0 0
    %1236 = vmatpush.bf16.msra.mxu0 0
    %1237 = vmatpush.bf16.msra.mxu0 0
    %1238 = vmatpush.bf16.msra.mxu0 0
    %1239 = vmatpush.bf16.msra.mxu0 %v1191
    %1240 = vmatmul.bf16.gmra.mxu0 %v1179
    %v1241 = vpop.f32.mrf.mxu0
    %v1242 = vadd.f32 0.0, %v1241
    %v1243 = vpop.f32.mrf.mxu0
    %1244 = vdwg.mxu0
    %v1245 = vadd.f32 %v1120, %v1203
    %v1246 = vadd.f32 %v1133, %v1216
    %v1247 = vadd.f32 %v1146, %v1229
    %v1248 = vadd.f32 %v1159, %v1242
    %s1249 = scalar_lea.vmem %s2, 12
    %v1250 = vld [vmem:[%s1249] sm:$0xf]
    %1251 = vrot.lane.b32.xlu0 %v1007, 112
    %v1252 = vpop.permute.xlu0 %1251
    %1253 = vrot.lane.b32.xlu0 %v1001, 112
    %v1254 = vpop.permute.xlu0 %1253
    %1255 = vrot.lane.b32.xlu0 %v1002, 112
    %v1256 = vpop.permute.xlu0 %1255
    %1257 = vrot.lane.b32.xlu0 %v1003, 112
    %v1258 = vpop.permute.xlu0 %1257
    %1259 = vrot.lane.b32.xlu0 %v1009, 112
    %v1260 = vpop.permute.xlu0 %1259
    %v1261 = vsel %vm389, %v1252, %v1254
    %v1262 = vsel %vm389, %v1254, %v1256
    %v1263 = vsel %vm389, %v1256, %v1258
    %v1264 = vsel %vm389, %v1258, %v1260
    %v1266 = vsel %vm153, %v1250, 0
    %v1269 = vsel %vm157, %v1261, 0
    %v1272 = vsel %vm157, %v1262, 0
    %v1275 = vsel %vm157, %v1263, 0
    %v1278 = vsel %vm157, %v1264, 0
    %1280 = vmatpush.bf16.msra.mxu0 0
    %1281 = vmatpush.bf16.msra.mxu0 0
    %1282 = vmatpush.bf16.msra.mxu0 0
    %1283 = vmatpush.bf16.msra.mxu0 0
    %1284 = vmatpush.bf16.msra.mxu0 0
    %1285 = vmatpush.bf16.msra.mxu0 0
    %1286 = vmatpush.bf16.msra.mxu0 0
    %1287 = vmatpush.bf16.msra.mxu0 %v1269
    %1288 = vmatmul.bf16.gmra.mxu0 %v1266
    %v1289 = vpop.f32.mrf.mxu0
    %v1290 = vadd.f32 0.0, %v1289
    %v1291 = vpop.f32.mrf.mxu0
    %1292 = vdwg.mxu0
    %1293 = vmatpush.bf16.msra.mxu0 0
    %1294 = vmatpush.bf16.msra.mxu0 0
    %1295 = vmatpush.bf16.msra.mxu0 0
    %1296 = vmatpush.bf16.msra.mxu0 0
    %1297 = vmatpush.bf16.msra.mxu0 0
    %1298 = vmatpush.bf16.msra.mxu0 0
    %1299 = vmatpush.bf16.msra.mxu0 0
    %1300 = vmatpush.bf16.msra.mxu0 %v1272
    %1301 = vmatmul.bf16.gmra.mxu0 %v1266
    %v1302 = vpop.f32.mrf.mxu0
    %v1303 = vadd.f32 0.0, %v1302
    %v1304 = vpop.f32.mrf.mxu0
    %1305 = vdwg.mxu0
    %1306 = vmatpush.bf16.msra.mxu0 0
    %1307 = vmatpush.bf16.msra.mxu0 0
    %1308 = vmatpush.bf16.msra.mxu0 0
    %1309 = vmatpush.bf16.msra.mxu0 0
    %1310 = vmatpush.bf16.msra.mxu0 0
    %1311 = vmatpush.bf16.msra.mxu0 0
    %1312 = vmatpush.bf16.msra.mxu0 0
    %1313 = vmatpush.bf16.msra.mxu0 %v1275
    %1314 = vmatmul.bf16.gmra.mxu0 %v1266
    %v1315 = vpop.f32.mrf.mxu0
    %v1316 = vadd.f32 0.0, %v1315
    %v1317 = vpop.f32.mrf.mxu0
    %1318 = vdwg.mxu0
    %1319 = vmatpush.bf16.msra.mxu0 0
    %1320 = vmatpush.bf16.msra.mxu0 0
    %1321 = vmatpush.bf16.msra.mxu0 0
    %1322 = vmatpush.bf16.msra.mxu0 0
    %1323 = vmatpush.bf16.msra.mxu0 0
    %1324 = vmatpush.bf16.msra.mxu0 0
    %1325 = vmatpush.bf16.msra.mxu0 0
    %1326 = vmatpush.bf16.msra.mxu0 %v1278
    %1327 = vmatmul.bf16.gmra.mxu0 %v1266
    %v1328 = vpop.f32.mrf.mxu0
    %v1329 = vadd.f32 0.0, %v1328
    %v1330 = vpop.f32.mrf.mxu0
    %1331 = vdwg.mxu0
    %v1332 = vadd.f32 %v1245, %v1290
    %v1333 = vadd.f32 %v1246, %v1303
    %v1334 = vadd.f32 %v1247, %v1316
    %v1335 = vadd.f32 %v1248, %v1329
    %s1336 = scalar_lea.vmem %s2, 16
    %v1337 = vld [vmem:[%s1336] sm:$0xf]
    %1338 = vrot.lane.b32.xlu0 %v1007, 111
    %v1339 = vpop.permute.xlu0 %1338
    %1340 = vrot.lane.b32.xlu0 %v1001, 111
    %v1341 = vpop.permute.xlu0 %1340
    %1342 = vrot.lane.b32.xlu0 %v1002, 111
    %v1343 = vpop.permute.xlu0 %1342
    %1344 = vrot.lane.b32.xlu0 %v1003, 111
    %v1345 = vpop.permute.xlu0 %1344
    %1346 = vrot.lane.b32.xlu0 %v1009, 111
    %v1347 = vpop.permute.xlu0 %1346
    %v1348 = vsel %vm477, %v1339, %v1341
    %v1349 = vsel %vm477, %v1341, %v1343
    %v1350 = vsel %vm477, %v1343, %v1345
    %v1351 = vsel %vm477, %v1345, %v1347
    %v1353 = vsel %vm153, %v1337, 0
    %v1356 = vsel %vm157, %v1348, 0
    %v1359 = vsel %vm157, %v1349, 0
    %v1362 = vsel %vm157, %v1350, 0
    %v1365 = vsel %vm157, %v1351, 0
    %1367 = vmatpush.bf16.msra.mxu0 0
    %1368 = vmatpush.bf16.msra.mxu0 0
    %1369 = vmatpush.bf16.msra.mxu0 0
    %1370 = vmatpush.bf16.msra.mxu0 0
    %1371 = vmatpush.bf16.msra.mxu0 0
    %1372 = vmatpush.bf16.msra.mxu0 0
    %1373 = vmatpush.bf16.msra.mxu0 0
    %1374 = vmatpush.bf16.msra.mxu0 %v1356
    %1375 = vmatmul.bf16.gmra.mxu0 %v1353
    %v1376 = vpop.f32.mrf.mxu0
    %v1377 = vadd.f32 0.0, %v1376
    %v1378 = vpop.f32.mrf.mxu0
    %1379 = vdwg.mxu0
    %1380 = vmatpush.bf16.msra.mxu0 0
    %1381 = vmatpush.bf16.msra.mxu0 0
    %1382 = vmatpush.bf16.msra.mxu0 0
    %1383 = vmatpush.bf16.msra.mxu0 0
    %1384 = vmatpush.bf16.msra.mxu0 0
    %1385 = vmatpush.bf16.msra.mxu0 0
    %1386 = vmatpush.bf16.msra.mxu0 0
    %1387 = vmatpush.bf16.msra.mxu0 %v1359
    %1388 = vmatmul.bf16.gmra.mxu0 %v1353
    %v1389 = vpop.f32.mrf.mxu0
    %v1390 = vadd.f32 0.0, %v1389
    %v1391 = vpop.f32.mrf.mxu0
    %1392 = vdwg.mxu0
    %1393 = vmatpush.bf16.msra.mxu0 0
    %1394 = vmatpush.bf16.msra.mxu0 0
    %1395 = vmatpush.bf16.msra.mxu0 0
    %1396 = vmatpush.bf16.msra.mxu0 0
    %1397 = vmatpush.bf16.msra.mxu0 0
    %1398 = vmatpush.bf16.msra.mxu0 0
    %1399 = vmatpush.bf16.msra.mxu0 0
    %1400 = vmatpush.bf16.msra.mxu0 %v1362
    %1401 = vmatmul.bf16.gmra.mxu0 %v1353
    %v1402 = vpop.f32.mrf.mxu0
    %v1403 = vadd.f32 0.0, %v1402
    %v1404 = vpop.f32.mrf.mxu0
    %1405 = vdwg.mxu0
    %1406 = vmatpush.bf16.msra.mxu0 0
    %1407 = vmatpush.bf16.msra.mxu0 0
    %1408 = vmatpush.bf16.msra.mxu0 0
    %1409 = vmatpush.bf16.msra.mxu0 0
    %1410 = vmatpush.bf16.msra.mxu0 0
    %1411 = vmatpush.bf16.msra.mxu0 0
    %1412 = vmatpush.bf16.msra.mxu0 0
    %1413 = vmatpush.bf16.msra.mxu0 %v1365
    %1414 = vmatmul.bf16.gmra.mxu0 %v1353
    %v1415 = vpop.f32.mrf.mxu0
    %v1416 = vadd.f32 0.0, %v1415
    %v1417 = vpop.f32.mrf.mxu0
    %1418 = vdwg.mxu0
    %v1419 = vadd.f32 %v1332, %v1377
    %v1420 = vadd.f32 %v1333, %v1390
    %v1421 = vadd.f32 %v1334, %v1403
    %v1422 = vadd.f32 %v1335, %v1416
    %s1423 = scalar_lea.vmem %s2, 20
    %v1424 = vld [vmem:[%s1423] sm:$0xf]
    %1425 = vrot.lane.b32.xlu0 %v1007, 110
    %v1426 = vpop.permute.xlu0 %1425
    %1427 = vrot.lane.b32.xlu0 %v1001, 110
    %v1428 = vpop.permute.xlu0 %1427
    %1429 = vrot.lane.b32.xlu0 %v1002, 110
    %v1430 = vpop.permute.xlu0 %1429
    %1431 = vrot.lane.b32.xlu0 %v1003, 110
    %v1432 = vpop.permute.xlu0 %1431
    %1433 = vrot.lane.b32.xlu0 %v1009, 110
    %v1434 = vpop.permute.xlu0 %1433
    %v1435 = vsel %vm565, %v1426, %v1428
    %v1436 = vsel %vm565, %v1428, %v1430
    %v1437 = vsel %vm565, %v1430, %v1432
    %v1438 = vsel %vm565, %v1432, %v1434
    %v1440 = vsel %vm153, %v1424, 0
    %v1443 = vsel %vm157, %v1435, 0
    %v1446 = vsel %vm157, %v1436, 0
    %v1449 = vsel %vm157, %v1437, 0
    %v1452 = vsel %vm157, %v1438, 0
    %1454 = vmatpush.bf16.msra.mxu0 0
    %1455 = vmatpush.bf16.msra.mxu0 0
    %1456 = vmatpush.bf16.msra.mxu0 0
    %1457 = vmatpush.bf16.msra.mxu0 0
    %1458 = vmatpush.bf16.msra.mxu0 0
    %1459 = vmatpush.bf16.msra.mxu0 0
    %1460 = vmatpush.bf16.msra.mxu0 0
    %1461 = vmatpush.bf16.msra.mxu0 %v1443
    %1462 = vmatmul.bf16.gmra.mxu0 %v1440
    %v1463 = vpop.f32.mrf.mxu0
    %v1464 = vadd.f32 0.0, %v1463
    %v1465 = vpop.f32.mrf.mxu0
    %1466 = vdwg.mxu0
    %1467 = vmatpush.bf16.msra.mxu0 0
    %1468 = vmatpush.bf16.msra.mxu0 0
    %1469 = vmatpush.bf16.msra.mxu0 0
    %1470 = vmatpush.bf16.msra.mxu0 0
    %1471 = vmatpush.bf16.msra.mxu0 0
    %1472 = vmatpush.bf16.msra.mxu0 0
    %1473 = vmatpush.bf16.msra.mxu0 0
    %1474 = vmatpush.bf16.msra.mxu0 %v1446
    %1475 = vmatmul.bf16.gmra.mxu0 %v1440
    %v1476 = vpop.f32.mrf.mxu0
    %v1477 = vadd.f32 0.0, %v1476
    %v1478 = vpop.f32.mrf.mxu0
    %1479 = vdwg.mxu0
    %1480 = vmatpush.bf16.msra.mxu0 0
    %1481 = vmatpush.bf16.msra.mxu0 0
    %1482 = vmatpush.bf16.msra.mxu0 0
    %1483 = vmatpush.bf16.msra.mxu0 0
    %1484 = vmatpush.bf16.msra.mxu0 0
    %1485 = vmatpush.bf16.msra.mxu0 0
    %1486 = vmatpush.bf16.msra.mxu0 0
    %1487 = vmatpush.bf16.msra.mxu0 %v1449
    %1488 = vmatmul.bf16.gmra.mxu0 %v1440
    %v1489 = vpop.f32.mrf.mxu0
    %v1490 = vadd.f32 0.0, %v1489
    %v1491 = vpop.f32.mrf.mxu0
    %1492 = vdwg.mxu0
    %1493 = vmatpush.bf16.msra.mxu0 0
    %1494 = vmatpush.bf16.msra.mxu0 0
    %1495 = vmatpush.bf16.msra.mxu0 0
    %1496 = vmatpush.bf16.msra.mxu0 0
    %1497 = vmatpush.bf16.msra.mxu0 0
    %1498 = vmatpush.bf16.msra.mxu0 0
    %1499 = vmatpush.bf16.msra.mxu0 0
    %1500 = vmatpush.bf16.msra.mxu0 %v1452
    %1501 = vmatmul.bf16.gmra.mxu0 %v1440
    %v1502 = vpop.f32.mrf.mxu0
    %v1503 = vadd.f32 0.0, %v1502
    %v1504 = vpop.f32.mrf.mxu0
    %1505 = vdwg.mxu0
    %v1506 = vadd.f32 %v1419, %v1464
    %v1507 = vadd.f32 %v1420, %v1477
    %v1508 = vadd.f32 %v1421, %v1490
    %v1509 = vadd.f32 %v1422, %v1503
    %s1510 = scalar_lea.vmem %s2, 24
    %v1511 = vld [vmem:[%s1510] sm:$0xf]
    %1512 = vrot.lane.b32.xlu0 %v1007, 96
    %v1513 = vpop.permute.xlu0 %1512
    %1514 = vrot.lane.b32.xlu0 %v1001, 96
    %v1515 = vpop.permute.xlu0 %1514
    %1516 = vrot.lane.b32.xlu0 %v1002, 96
    %v1517 = vpop.permute.xlu0 %1516
    %1518 = vrot.lane.b32.xlu0 %v1003, 96
    %v1519 = vpop.permute.xlu0 %1518
    %1520 = vrot.lane.b32.xlu0 %v1009, 96
    %v1521 = vpop.permute.xlu0 %1520
    %v1522 = vsel %vm653, %v1513, %v1515
    %v1523 = vsel %vm653, %v1515, %v1517
    %v1524 = vsel %vm653, %v1517, %v1519
    %v1525 = vsel %vm653, %v1519, %v1521
    %v1527 = vsel %vm153, %v1511, 0
    %v1530 = vsel %vm157, %v1522, 0
    %v1533 = vsel %vm157, %v1523, 0
    %v1536 = vsel %vm157, %v1524, 0
    %v1539 = vsel %vm157, %v1525, 0
    %1541 = vmatpush.bf16.msra.mxu0 0
    %1542 = vmatpush.bf16.msra.mxu0 0
    %1543 = vmatpush.bf16.msra.mxu0 0
    %1544 = vmatpush.bf16.msra.mxu0 0
    %1545 = vmatpush.bf16.msra.mxu0 0
    %1546 = vmatpush.bf16.msra.mxu0 0
    %1547 = vmatpush.bf16.msra.mxu0 0
    %1548 = vmatpush.bf16.msra.mxu0 %v1530
    %1549 = vmatmul.bf16.gmra.mxu0 %v1527
    %v1550 = vpop.f32.mrf.mxu0
    %v1551 = vadd.f32 0.0, %v1550
    %v1552 = vpop.f32.mrf.mxu0
    %1553 = vdwg.mxu0
    %1554 = vmatpush.bf16.msra.mxu0 0
    %1555 = vmatpush.bf16.msra.mxu0 0
    %1556 = vmatpush.bf16.msra.mxu0 0
    %1557 = vmatpush.bf16.msra.mxu0 0
    %1558 = vmatpush.bf16.msra.mxu0 0
    %1559 = vmatpush.bf16.msra.mxu0 0
    %1560 = vmatpush.bf16.msra.mxu0 0
    %1561 = vmatpush.bf16.msra.mxu0 %v1533
    %1562 = vmatmul.bf16.gmra.mxu0 %v1527
    %v1563 = vpop.f32.mrf.mxu0
    %v1564 = vadd.f32 0.0, %v1563
    %v1565 = vpop.f32.mrf.mxu0
    %1566 = vdwg.mxu0
    %1567 = vmatpush.bf16.msra.mxu0 0
    %1568 = vmatpush.bf16.msra.mxu0 0
    %1569 = vmatpush.bf16.msra.mxu0 0
    %1570 = vmatpush.bf16.msra.mxu0 0
    %1571 = vmatpush.bf16.msra.mxu0 0
    %1572 = vmatpush.bf16.msra.mxu0 0
    %1573 = vmatpush.bf16.msra.mxu0 0
    %1574 = vmatpush.bf16.msra.mxu0 %v1536
    %1575 = vmatmul.bf16.gmra.mxu0 %v1527
    %v1576 = vpop.f32.mrf.mxu0
    %v1577 = vadd.f32 0.0, %v1576
    %v1578 = vpop.f32.mrf.mxu0
    %1579 = vdwg.mxu0
    %1580 = vmatpush.bf16.msra.mxu0 0
    %1581 = vmatpush.bf16.msra.mxu0 0
    %1582 = vmatpush.bf16.msra.mxu0 0
    %1583 = vmatpush.bf16.msra.mxu0 0
    %1584 = vmatpush.bf16.msra.mxu0 0
    %1585 = vmatpush.bf16.msra.mxu0 0
    %1586 = vmatpush.bf16.msra.mxu0 0
    %1587 = vmatpush.bf16.msra.mxu0 %v1539
    %1588 = vmatmul.bf16.gmra.mxu0 %v1527
    %v1589 = vpop.f32.mrf.mxu0
    %v1590 = vadd.f32 0.0, %v1589
    %v1591 = vpop.f32.mrf.mxu0
    %1592 = vdwg.mxu0
    %v1593 = vadd.f32 %v1506, %v1551
    %v1594 = vadd.f32 %v1507, %v1564
    %v1595 = vadd.f32 %v1508, %v1577
    %v1596 = vadd.f32 %v1509, %v1590
    %s1597 = scalar_lea.vmem %s2, 28
    %v1598 = vld [vmem:[%s1597] sm:$0xf]
    %1599 = vrot.lane.b32.xlu0 %v1007, 95
    %v1600 = vpop.permute.xlu0 %1599
    %1601 = vrot.lane.b32.xlu0 %v1001, 95
    %v1602 = vpop.permute.xlu0 %1601
    %1603 = vrot.lane.b32.xlu0 %v1002, 95
    %v1604 = vpop.permute.xlu0 %1603
    %1605 = vrot.lane.b32.xlu0 %v1003, 95
    %v1606 = vpop.permute.xlu0 %1605
    %1607 = vrot.lane.b32.xlu0 %v1009, 95
    %v1608 = vpop.permute.xlu0 %1607
    %v1609 = vsel %vm741, %v1600, %v1602
    %v1610 = vsel %vm741, %v1602, %v1604
    %v1611 = vsel %vm741, %v1604, %v1606
    %v1612 = vsel %vm741, %v1606, %v1608
    %v1614 = vsel %vm153, %v1598, 0
    %v1617 = vsel %vm157, %v1609, 0
    %v1620 = vsel %vm157, %v1610, 0
    %v1623 = vsel %vm157, %v1611, 0
    %v1626 = vsel %vm157, %v1612, 0
    %1628 = vmatpush.bf16.msra.mxu0 0
    %1629 = vmatpush.bf16.msra.mxu0 0
    %1630 = vmatpush.bf16.msra.mxu0 0
    %1631 = vmatpush.bf16.msra.mxu0 0
    %1632 = vmatpush.bf16.msra.mxu0 0
    %1633 = vmatpush.bf16.msra.mxu0 0
    %1634 = vmatpush.bf16.msra.mxu0 0
    %1635 = vmatpush.bf16.msra.mxu0 %v1617
    %1636 = vmatmul.bf16.gmra.mxu0 %v1614
    %v1637 = vpop.f32.mrf.mxu0
    %v1638 = vadd.f32 0.0, %v1637
    %v1639 = vpop.f32.mrf.mxu0
    %1640 = vdwg.mxu0
    %1641 = vmatpush.bf16.msra.mxu0 0
    %1642 = vmatpush.bf16.msra.mxu0 0
    %1643 = vmatpush.bf16.msra.mxu0 0
    %1644 = vmatpush.bf16.msra.mxu0 0
    %1645 = vmatpush.bf16.msra.mxu0 0
    %1646 = vmatpush.bf16.msra.mxu0 0
    %1647 = vmatpush.bf16.msra.mxu0 0
    %1648 = vmatpush.bf16.msra.mxu0 %v1620
    %1649 = vmatmul.bf16.gmra.mxu0 %v1614
    %v1650 = vpop.f32.mrf.mxu0
    %v1651 = vadd.f32 0.0, %v1650
    %v1652 = vpop.f32.mrf.mxu0
    %1653 = vdwg.mxu0
    %1654 = vmatpush.bf16.msra.mxu0 0
    %1655 = vmatpush.bf16.msra.mxu0 0
    %1656 = vmatpush.bf16.msra.mxu0 0
    %1657 = vmatpush.bf16.msra.mxu0 0
    %1658 = vmatpush.bf16.msra.mxu0 0
    %1659 = vmatpush.bf16.msra.mxu0 0
    %1660 = vmatpush.bf16.msra.mxu0 0
    %1661 = vmatpush.bf16.msra.mxu0 %v1623
    %1662 = vmatmul.bf16.gmra.mxu0 %v1614
    %v1663 = vpop.f32.mrf.mxu0
    %v1664 = vadd.f32 0.0, %v1663
    %v1665 = vpop.f32.mrf.mxu0
    %1666 = vdwg.mxu0
    %1667 = vmatpush.bf16.msra.mxu0 0
    %1668 = vmatpush.bf16.msra.mxu0 0
    %1669 = vmatpush.bf16.msra.mxu0 0
    %1670 = vmatpush.bf16.msra.mxu0 0
    %1671 = vmatpush.bf16.msra.mxu0 0
    %1672 = vmatpush.bf16.msra.mxu0 0
    %1673 = vmatpush.bf16.msra.mxu0 0
    %1674 = vmatpush.bf16.msra.mxu0 %v1626
    %1675 = vmatmul.bf16.gmra.mxu0 %v1614
    %v1676 = vpop.f32.mrf.mxu0
    %v1677 = vadd.f32 0.0, %v1676
    %v1678 = vpop.f32.mrf.mxu0
    %1679 = vdwg.mxu0
    %v1680 = vadd.f32 %v1593, %v1638
    %v1681 = vadd.f32 %v1594, %v1651
    %v1682 = vadd.f32 %v1595, %v1664
    %v1683 = vadd.f32 %v1596, %v1677
    %s1684 = scalar_lea.vmem %s2, 32
    %v1685 = vld [vmem:[%s1684] sm:$0xf]
    %1686 = vrot.lane.b32.xlu0 %v1007, 94
    %v1687 = vpop.permute.xlu0 %1686
    %1688 = vrot.lane.b32.xlu0 %v1001, 94
    %v1689 = vpop.permute.xlu0 %1688
    %1690 = vrot.lane.b32.xlu0 %v1002, 94
    %v1691 = vpop.permute.xlu0 %1690
    %1692 = vrot.lane.b32.xlu0 %v1003, 94
    %v1693 = vpop.permute.xlu0 %1692
    %1694 = vrot.lane.b32.xlu0 %v1009, 94
    %v1695 = vpop.permute.xlu0 %1694
    %v1696 = vsel %vm829, %v1687, %v1689
    %v1697 = vsel %vm829, %v1689, %v1691
    %v1698 = vsel %vm829, %v1691, %v1693
    %v1699 = vsel %vm829, %v1693, %v1695
    %v1701 = vsel %vm153, %v1685, 0
    %v1704 = vsel %vm157, %v1696, 0
    %v1707 = vsel %vm157, %v1697, 0
    %v1710 = vsel %vm157, %v1698, 0
    %v1713 = vsel %vm157, %v1699, 0
    %1715 = vmatpush.bf16.msra.mxu0 0
    %1716 = vmatpush.bf16.msra.mxu0 0
    %1717 = vmatpush.bf16.msra.mxu0 0
    %1718 = vmatpush.bf16.msra.mxu0 0
    %1719 = vmatpush.bf16.msra.mxu0 0
    %1720 = vmatpush.bf16.msra.mxu0 0
    %1721 = vmatpush.bf16.msra.mxu0 0
    %1722 = vmatpush.bf16.msra.mxu0 %v1704
    %1723 = vmatmul.bf16.gmra.mxu0 %v1701
    %v1724 = vpop.f32.mrf.mxu0
    %v1725 = vadd.f32 0.0, %v1724
    %v1726 = vpop.f32.mrf.mxu0
    %1727 = vdwg.mxu0
    %1728 = vmatpush.bf16.msra.mxu0 0
    %1729 = vmatpush.bf16.msra.mxu0 0
    %1730 = vmatpush.bf16.msra.mxu0 0
    %1731 = vmatpush.bf16.msra.mxu0 0
    %1732 = vmatpush.bf16.msra.mxu0 0
    %1733 = vmatpush.bf16.msra.mxu0 0
    %1734 = vmatpush.bf16.msra.mxu0 0
    %1735 = vmatpush.bf16.msra.mxu0 %v1707
    %1736 = vmatmul.bf16.gmra.mxu0 %v1701
    %v1737 = vpop.f32.mrf.mxu0
    %v1738 = vadd.f32 0.0, %v1737
    %v1739 = vpop.f32.mrf.mxu0
    %1740 = vdwg.mxu0
    %1741 = vmatpush.bf16.msra.mxu0 0
    %1742 = vmatpush.bf16.msra.mxu0 0
    %1743 = vmatpush.bf16.msra.mxu0 0
    %1744 = vmatpush.bf16.msra.mxu0 0
    %1745 = vmatpush.bf16.msra.mxu0 0
    %1746 = vmatpush.bf16.msra.mxu0 0
    %1747 = vmatpush.bf16.msra.mxu0 0
    %1748 = vmatpush.bf16.msra.mxu0 %v1710
    %1749 = vmatmul.bf16.gmra.mxu0 %v1701
    %v1750 = vpop.f32.mrf.mxu0
    %v1751 = vadd.f32 0.0, %v1750
    %v1752 = vpop.f32.mrf.mxu0
    %1753 = vdwg.mxu0
    %1754 = vmatpush.bf16.msra.mxu0 0
    %1755 = vmatpush.bf16.msra.mxu0 0
    %1756 = vmatpush.bf16.msra.mxu0 0
    %1757 = vmatpush.bf16.msra.mxu0 0
    %1758 = vmatpush.bf16.msra.mxu0 0
    %1759 = vmatpush.bf16.msra.mxu0 0
    %1760 = vmatpush.bf16.msra.mxu0 0
    %1761 = vmatpush.bf16.msra.mxu0 %v1713
    %1762 = vmatmul.bf16.gmra.mxu0 %v1701
    %v1763 = vpop.f32.mrf.mxu0
    %v1764 = vadd.f32 0.0, %v1763
    %v1765 = vpop.f32.mrf.mxu0
    %1766 = vdwg.mxu0
    %v1767 = vadd.f32 %v1680, %v1725
    %v1768 = vadd.f32 %v1681, %v1738
    %v1769 = vadd.f32 %v1682, %v1751
    %v1770 = vadd.f32 %v1683, %v1764
    %1771 = vset.pattern.permute.xlu0 3
    %1772 = vperm.xlu0 %1771, %v121
    %v1773 = vpop.permute.xlu0 %1772
    %v1775 = vadd.f32 %v1767, %v1773
    %v1776 = vadd.f32 %v1768, %v1773
    %v1777 = vadd.f32 %v1769, %v1773
    %v1778 = vadd.f32 %v1770, %v1773
    %v1779 = vmax.f32 %v1775, 0.0
    %v1780 = vmax.f32 %v1776, 0.0
    %v1781 = vmax.f32 %v1777, 0.0
    %v1782 = vmax.f32 %v1778, 0.0
    %v1783 = vmul.f32 %v1779, %v48
    %v1784 = vmul.f32 %v1780, %v49
    %v1785 = vmul.f32 %v1781, %v50
    %v1786 = vmul.f32 %v1782, %v51
    %v1787 = vadd.f32 %v1783, %v1784
    %v1788 = vadd.f32 %v1787, %v1785
    %v1789 = vadd.f32 %v1788, %v1786
    %1790 = vadd.xlane.f32.xlu0 %v1789
    %v1791 = vpop.xlane.xlu0 %1790
    %v1792 = vmul.f32 %v1783, %v1783
    %v1793 = vmul.f32 %v1784, %v1784
    %v1794 = vmul.f32 %v1785, %v1785
    %v1795 = vmul.f32 %v1786, %v1786
    %v1796 = vadd.f32 %v1792, %v1793
    %v1797 = vadd.f32 %v1796, %v1794
    %v1798 = vadd.f32 %v1797, %v1795
    %1799 = vadd.xlane.f32.xlu0 %v1798
    %v1800 = vpop.xlane.xlu0 %1799
    %v1801 = vmul.f32 %v1791, 0.0078125
    %v1802 = vmul.f32 %v1800, 0.0078125
    %v1803 = vmul.f32 %v1801, %v1801
    %v1804 = vsub.f32 %v1802, %v1803
    %v1805 = vadd.f32 %v1804, 1e-05
    %v1806 = vrsqrt.pop %v1805
    %v1807 = vmul.f32 %v1806, %v1805
    %v1808 = vmul.f32 %v1807, %v1806
    %v1809 = vmul.f32 0.5, %v1808
    %v1810 = vsub.f32 1.5, %v1809
    %v1811 = vmul.f32 %v1806, %v1810
    %vm1812 = vweird.f32 %v1805
    %vm1813 = vweird.f32 %v1806
    %vm1814 = vmor %vm1812, %vm1813
    %v1815 = vsel %vm1814, %v1806, %v1811
    %v1816 = vmul.f32 %v121, %v1815
    %v1817 = vmul.f32 %v1801, %v1816
    %1819 = vrot.lane.b32.xlu0 %v1817, 1
    %v1820 = vpop.permute.xlu0 %1819
    %v1822 = vsub.f32 %v121, %v1820
    %1824 = vset.pattern.permute.xlu0 4
    %1825 = vperm.xlu0 %1824, %v1816
    %v1826 = vpop.permute.xlu0 %1825
    %v1828 = vmul.f32 %v1783, %v1826
    %v1829 = vmul.f32 %v1784, %v1826
    %v1830 = vmul.f32 %v1785, %v1826
    %v1831 = vmul.f32 %v1786, %v1826
    %1833 = vset.pattern.permute.xlu0 5
    %1834 = vperm.xlu0 %1833, %v1822
    %v1835 = vpop.permute.xlu0 %1834
    %v1837 = vadd.f32 %v1828, %v1835
    %v1838 = vadd.f32 %v1829, %v1835
    %v1839 = vadd.f32 %v1830, %v1835
    %v1840 = vadd.f32 %v1831, %v1835
    %1841 = vst [vmem:[#allocation2] sm:$0xff] %v1837
    %1842 = vst [vmem:[#allocation2 + $0x8] sm:$0xff] %v1838
    %1843 = vst [vmem:[#allocation2 + $0x10] sm:$0xff] %v1839
    %1844 = vst [vmem:[#allocation2 + $0x18] sm:$0xff] %v1840
    // Predicated region
    $region18: #{tpu_custom_call.1} parent=1 // pred_check
      _
    $region19: #{tpu_custom_call.1} parent=1 // pred_check_branch
      %1846 = sbr.rel (0) target = $region21
    $region20: #{tpu_custom_call.1} parent=1 // pred_region
      %1848 = vsyncadd [#allocation3], 0
      %s1850 = sshll.u32 [#allocation2], 4
      %s1851 = int_to_ptr.vmem [resolvable:$true] %s1850
      %s1852 = sshll.u32 %s4, 4
      %s1853 = int_to_ptr.hbm [resolvable:$true] %s1852
      %1855 = dma.vmem_to_hbm [thread:$0]  %s1851, 512, %s1853, [#allocation3]
    $region21: #{tpu_custom_call.1} parent=1 // pred_fallthru
      _
    // Predicated region
    $region22: #{tpu_custom_call.1} parent=1 // pred_check
      _
    $region23: #{tpu_custom_call.1} parent=1 // pred_check_branch
      %1857 = sbr.rel (0) target = $region25
    $region24: #{tpu_custom_call.1} parent=1 // pred_region
      %1859 = dma.done [#allocation3], 512
    $region25: #{tpu_custom_call.1} parent=1 // pred_fallthru
      _
    %1860 = vsyncpa [#allocation3], 1

</llo_original>
